<compile_context>
chip_gen: v5e
topology: v5e:2x2
jax: 0.10.0
libtpu: 0.0.40
codegen_flags: <defaults>
</compile_context>

<pallas_src>
import functools

import jax
import jax.numpy as jnp
from jax.experimental import pallas as pl
from jax.experimental.pallas import tpu as pltpu


# ----------------------------------------------------------------------------
# Generation-aware compiler params
# ----------------------------------------------------------------------------
def _vmem_limit_bytes():
    """~3/4 of physical VMEM (48 MiB on v7x, 96 MiB on v5e/v6e); None if unknown."""
    try:
        cap = int(pltpu.get_tpu_info().vmem_capacity_bytes)
        return max(32 * 1024 * 1024, (cap * 3) // 4)
    except Exception:
        return None


def _compiler_params(dim_sem):
    kw = dict(dimension_semantics=dim_sem)
    lim = _vmem_limit_bytes()
    if lim is not None:
        kw["vmem_limit_bytes"] = lim
    return pltpu.CompilerParams(**kw)


def _col_masks(N, W, patch, dtype):
    """Column-validity masks [patch, N] for the lazy unfold (row halo is zeros)."""
    pad = (patch - 1) // 2
    j = jnp.arange(N, dtype=jnp.int32) % W
    rows = [((j + (kj - pad) >= 0) & (j + (kj - pad) < W)) for kj in range(patch)]
    return jnp.stack(rows).astype(dtype)     # [patch, N]


# ----------------------------------------------------------------------------
# Kernel A: fused qkv 1x1 conv + patch-unfold linear attention
#           grid = (batch, head); blocks are lane-dense [*, N]
# ----------------------------------------------------------------------------
def _qkv_attn_kernel(x_ref, w_ref, b_ref, cmask_ref, o_ref,
                     qpad_ref, kpad_ref, vaug_ref, qunf_ref, kv_ref, *,
                     patch, W, eps, compute_dtype, approx_recip):
    Dv = o_ref.shape[1]
    N = o_ref.shape[2]
    pad = (patch - 1) // 2
    pa = pad * (W + 1)                 # flat-N halo width

    # ---- fused qkv 1x1 conv for this (batch, head): [3Dv,C] @ [C,N] (MXU) ----
    x = x_ref[0].astype(compute_dtype)                         # [C, N]
    qkv = jax.lax.dot_general(w_ref[0], x, (((1,), (0,)), ((), ())),
                              preferred_element_type=jnp.float32)
    qkv = qkv + b_ref[0]                                       # [3Dv,1] bcast
    q_h = jnp.maximum(qkv[:Dv], 0.0).astype(compute_dtype)     # fused ReLU(q)
    k_h = jnp.maximum(qkv[Dv:2 * Dv], 0.0).astype(compute_dtype)
    v_h = qkv[2 * Dv:].astype(compute_dtype)

    # ---- zero-halo staging for the lazy unfold (no HBM pad round trip) ----
    if pa > 0:
        zhalo = jnp.zeros((Dv, pa), compute_dtype)
        qpad_ref[:, pl.ds(0, pa)] = zhalo
        qpad_ref[:, pl.ds(pa + N, pa)] = zhalo
        kpad_ref[:, pl.ds(0, pa)] = zhalo
        kpad_ref[:, pl.ds(pa + N, pa)] = zhalo
    qpad_ref[:, pl.ds(pa, N)] = q_h
    kpad_ref[:, pl.ds(pa, N)] = k_h

    # v augmented with a ones row: the last row of k^T v_aug is sum_n k_n,
    # i.e. the denominator comes for free inside the same MXU matmul.
    vaug_ref[pl.ds(0, Dv), :] = v_h
    vaug_ref[pl.ds(Dv, 1), :] = jnp.ones((1, N), compute_dtype)
    v_aug = vaug_ref[...]                                      # [Dv+1, N]

    # ---- pass 1: per-offset k^T v_aug + stage the lazily-unfolded q --------
    for ki in range(patch):
        di = ki - pad
        for kj in range(patch):
            dj = kj - pad
            idx = ki * patch + kj
            start = pa + di * W + dj
            q_off = qpad_ref[:, pl.ds(start, N)]               # [Dv, N]
            k_off = kpad_ref[:, pl.ds(start, N)]
            if dj != 0:                    # center-column mask is all ones
                mask = cmask_ref[pl.ds(kj, 1), :]              # [1, N]
                q_off = q_off * mask
                k_off = k_off * mask
            qunf_ref[pl.ds(idx * Dv, Dv), :] = q_off
            # kv[c, e] = sum_n k_off[c, n] * v_aug[e, n]   (MXU, no XLU xpose)
            kv_ref[pl.ds(idx * Dv, Dv), :] = jax.lax.dot_general(
                k_off, v_aug, (((1,), (1,)), ((), ())),
                preferred_element_type=jnp.float32)

    # ---- pass 2: one fat-K matmul (K = Dv*p^2) gives num and den ----------
    kv = kv_ref[...].astype(compute_dtype)                     # [Dk, Dv+1]
    num_den = jax.lax.dot_general(kv, qunf_ref[...],
                                  (((0,), (0,)), ((), ())),
                                  preferred_element_type=jnp.float32)  # [Dv+1,N]
    num = num_den[:Dv]
    den = num_den[Dv:Dv + 1]
    inv = pl.reciprocal(den + eps, approx=approx_recip)        # EUP
    o_ref[0] = (num * inv).astype(o_ref.dtype)


def fused_qkv_linear_attn(x_bcn, w_h, b_h, *, num_heads, patch, W, eps,
                          compute_dtype):
    B, C, N = x_bcn.shape
    Dv = C // num_heads
    pad = (patch - 1) // 2
    pa = pad * (W + 1)
    cmask = _col_masks(N, W, patch, compute_dtype)
    approx = compute_dtype != jnp.float32
    kern = functools.partial(_qkv_attn_kernel, patch=patch, W=W, eps=eps,
                             compute_dtype=compute_dtype, approx_recip=approx)
    return pl.pallas_call(
        kern,
        out_shape=jax.ShapeDtypeStruct((B, C, N), compute_dtype),
        grid_spec=pltpu.PrefetchScalarGridSpec(
            num_scalar_prefetch=0,
            grid=(B, num_heads),
            in_specs=[
                # x stays resident across the head axis (same block index).
                pl.BlockSpec((1, C, N), lambda bi, hi: (bi, 0, 0)),
                pl.BlockSpec((1, 3 * Dv, C), lambda bi, hi: (hi, 0, 0)),
                pl.BlockSpec((1, 3 * Dv, 1), lambda bi, hi: (hi, 0, 0)),
                pl.BlockSpec((patch, N), lambda bi, hi: (0, 0)),
            ],
            out_specs=pl.BlockSpec((1, Dv, N), lambda bi, hi: (bi, hi, 0)),
            scratch_shapes=[
                pltpu.VMEM((Dv, N + 2 * pa), compute_dtype),            # q halo
                pltpu.VMEM((Dv, N + 2 * pa), compute_dtype),            # k halo
                pltpu.VMEM((Dv + 1, N), compute_dtype),                 # v_aug
                pltpu.VMEM((Dv * patch * patch, N), compute_dtype),     # q_unf
                pltpu.VMEM((Dv * patch * patch, Dv + 1), jnp.float32),  # kv
            ]),
        compiler_params=_compiler_params(("parallel", "parallel")),
    )(x_bcn, w_h, b_h, cmask)


# ----------------------------------------------------------------------------
# Kernel B: 3x3 proj conv -- 3 matmuls with K = 3C (column taps slabbed)
# ----------------------------------------------------------------------------
def _proj3x3_kernel(x_ref, w_ref, b_ref, cmask_ref, o_ref, xpad_ref, slab_ref,
                    *, W):
    C = o_ref.shape[1]
    N = o_ref.shape[2]
    pa = W + 1
    dt = xpad_ref.dtype

    xpad_ref[:, pl.ds(0, pa)] = jnp.zeros((C, pa), dt)
    xpad_ref[:, pl.ds(pa + N, pa)] = jnp.zeros((C, pa), dt)
    xpad_ref[:, pl.ds(pa, N)] = x_ref[0].astype(dt)

    acc = jnp.zeros((C, N), jnp.float32)
    for ki in range(3):
        for kj in range(3):
            start = pa + (ki - 1) * W + (kj - 1)
            tap = xpad_ref[:, pl.ds(start, N)]                 # [C, N]
            if kj != 1:                    # center column mask is all ones
                tap = tap * cmask_ref[pl.ds(kj, 1), :]
            slab_ref[pl.ds(kj * C, C), :] = tap
        # acc += W_ki [C, 3C] @ slab [3C, N]   (fat contraction, MXU)
        acc = acc + jax.lax.dot_general(
            w_ref[ki], slab_ref[...], (((1,), (0,)), ((), ())),
            preferred_element_type=jnp.float32)
    o_ref[0] = (acc + b_ref[...]).astype(o_ref.dtype)


def conv3x3_proj(x_bcn, w3, b, *, W, compute_dtype, out_dtype=jnp.float32):
    B, C, N = x_bcn.shape
    pa = W + 1
    cmask = _col_masks(N, W, 3, compute_dtype)
    kern = functools.partial(_proj3x3_kernel, W=W)
    # TODO(synk): tile N (row-aligned tiles + W-lane halo) for very large maps.
    return pl.pallas_call(
        kern,
        out_shape=jax.ShapeDtypeStruct((B, C, N), out_dtype),
        grid_spec=pltpu.PrefetchScalarGridSpec(
            num_scalar_prefetch=0,
            grid=(B,),
            in_specs=[
                pl.BlockSpec((1, C, N), lambda bi: (bi, 0, 0)),
                pl.BlockSpec((3, C, 3 * C), lambda bi: (0, 0, 0)),
                pl.BlockSpec((C, 1), lambda bi: (0, 0)),
                pl.BlockSpec((3, N), lambda bi: (0, 0)),
            ],
            out_specs=pl.BlockSpec((1, C, N), lambda bi: (bi, 0, 0)),
            scratch_shapes=[
                pltpu.VMEM((C, N + 2 * pa), compute_dtype),    # halo stage
                pltpu.VMEM((3 * C, N), compute_dtype),         # 3-tap slab
            ]),
        compiler_params=_compiler_params(("parallel",)),
    )(x_bcn, w3, b, cmask)


# ----------------------------------------------------------------------------
# Module
# ----------------------------------------------------------------------------
class ConvMultiheadAttentionV2:
    """Forward-pass-equivalent reimplementation of convMultiheadAttetionV2."""

    def __init__(self, convDim, numHeads, patchSize, key,
                 compute_dtype=jnp.bfloat16):
        assert convDim % numHeads == 0
        assert patchSize % 2 == 1
        self.convDim = convDim
        self.numHeads = numHeads
        self.patchSize = patchSize
        self.compute_dtype = compute_dtype
        C = convDim
        Dv = C // numHeads
        k1, k2, k3, k4 = jax.random.split(key, 4)
        # f32 master weights (used by the pure-JAX reference).
        self.qkv_w_f32 = jax.random.normal(k1, (3 * C, C), jnp.float32) / (C ** 0.5)
        self.qkv_b = 0.02 * jax.random.normal(k2, (3 * C,), jnp.float32)
        self.proj_w_f32 = jax.random.normal(k3, (C, C, 3, 3), jnp.float32) / ((9 * C) ** 0.5)
        self.proj_b = 0.02 * jax.random.normal(k4, (C,), jnp.float32)
        # Per-head packed qkv weights [nH, 3*Dv, C] (rows: q_h | k_h | v_h).
        self.qkv_w_h = (self.qkv_w_f32.reshape(3, numHeads, Dv, C)
                        .transpose(1, 0, 2, 3).reshape(numHeads, 3 * Dv, C)
                        .astype(compute_dtype))
        self.qkv_b_h = (self.qkv_b.reshape(3, numHeads, Dv)
                        .transpose(1, 0, 2).reshape(numHeads, 3 * Dv, 1)
                        .astype(jnp.float32))
        # Row-tap packed 3x3 proj weights [3, C, 3C]:
        #   w3[ki][o, kj*C + c] == proj_w[o, c, ki, kj]
        self.proj_w3 = (jnp.transpose(self.proj_w_f32, (2, 0, 3, 1))
                        .reshape(3, C, 3 * C).astype(compute_dtype))

    def __call__(self, x):
        B, C, H, W = x.shape
        assert C == self.convDim
        N = H * W
        x_bcn = x.reshape(B, C, N)                   # free reshape (NCHW)
        o = fused_qkv_linear_attn(
            x_bcn, self.qkv_w_h, self.qkv_b_h,
            num_heads=self.numHeads, patch=self.patchSize, W=W, eps=1e-6,
            compute_dtype=self.compute_dtype)
        y = conv3x3_proj(o, self.proj_w3, self.proj_b.reshape(C, 1), W=W,
                         compute_dtype=self.compute_dtype,
                         out_dtype=jnp.float32)
        return y.reshape(B, C, H, W)                 # free reshape (NCHW)


# ----------------------------------------------------------------------------
# Pure-JAX f32 reference (for correctness check)
# ----------------------------------------------------------------------------
def unfold(x, patch):
    """torch.nn.functional.unfold(x, patch, padding=(patch-1)//2, stride=1)."""
    B, C, H, W = x.shape
    pad = (patch - 1) // 2
    xp = jnp.pad(x, ((0, 0), (0, 0), (pad, pad), (pad, pad)))
    cols = []
    for ki in range(patch):
        for kj in range(patch):
            cols.append(xp[:, :, ki:ki + H, kj:kj + W])
    col = jnp.stack(cols, axis=2)            # [B, C, p*p, H, W]
    return col.reshape(B, C * patch * patch, H * W)


def reference_forward(x, mod: ConvMultiheadAttentionV2):
    HI = jax.lax.Precision.HIGHEST
    B, C, H, W = x.shape
    N = H * W
    nH, p = mod.numHeads, mod.patchSize
    Dk = C * p * p // nH
    Dv = C // nH
    qkv = jnp.einsum('bchw,oc->bohw', x, mod.qkv_w_f32, precision=HI)
    qkv = qkv + mod.qkv_b[None, :, None, None]
    q, k, v = qkv[:, :C], qkv[:, C:2 * C], qkv[:, 2 * C:]
    q, k = jax.nn.relu(q), jax.nn.relu(k)
    q = unfold(q, p).reshape(B, nH, Dk, N).transpose(0, 1, 3, 2)
    k = unfold(k, p).reshape(B, nH, Dk, N).transpose(0, 1, 3, 2)
    v = v.reshape(B, nH, Dv, N).transpose(0, 1, 3, 2)
    kv = jnp.einsum('bhnd,bhne->bhde', k, v, precision=HI)
    z = k.sum(axis=2)
    num = jnp.einsum('bhnd,bhde->bhne', q, kv, precision=HI)
    den = jnp.einsum('bhnd,bhd->bhn', q, z, precision=HI)[..., None] + 1e-6
    o = (num / den).transpose(0, 1, 3, 2).reshape(B, C, H, W)
    col = unfold(o, 3)
    y = jnp.einsum('bkn,ok->bon', col, mod.proj_w_f32.reshape(C, C * 9),
                   precision=HI)
    y = y + mod.proj_b[None, :, None]
    return y.reshape(B, C, H, W)


if __name__ == "__main__":
    key = jax.random.PRNGKey(0)
    kx, kp = jax.random.split(key)

    # Dv = C // numHeads must be a multiple of 8 for the per-head BlockSpec.
    B, C, H, W = 2, 16, 16, 16
    numHeads, patchSize = 2, 3

    x = jax.random.normal(kx, (B, C, H, W), jnp.float32)

    # f32 compute path: structural correctness check (tight-ish tolerance).
    mod_f32 = ConvMultiheadAttentionV2(C, numHeads, patchSize, kp,
                                       compute_dtype=jnp.float32)
    out_f32 = jax.block_until_ready(mod_f32(x))
    ref = jax.block_until_ready(reference_forward(x, mod_f32))
    assert out_f32.shape == (B, C, H, W), out_f32.shape
    assert jnp.allclose(out_f32, ref, rtol=1e-2, atol=5e-3), \
        float(jnp.abs(out_f32 - ref).max())

    # bf16 MXU path (default / performance configuration): loose tolerance
    # covers the deliberate bf16 operand quantization.
    mod_bf16 = ConvMultiheadAttentionV2(C, numHeads, patchSize, kp,
                                        compute_dtype=jnp.bfloat16)
    out_bf16 = jax.block_until_ready(mod_bf16(x))
    assert out_bf16.shape == (B, C, H, W), out_bf16.shape
    assert jnp.allclose(out_bf16, ref, rtol=7.5e-2, atol=5e-2), \
        float(jnp.abs(out_bf16 - ref).max())

    print("KERNEL_OK")
</pallas_src>

<mosaic_0001>
module attributes {stable_mosaic.version = 11 : i64} {
  func.func @_qkv_attn_kernel(%arg0: i32, %arg1: i32, %arg2: memref<1x16x256xf32, #tpu.memory_space<vmem>>, %arg3: memref<1x24x16xf32, #tpu.memory_space<vmem>>, %arg4: memref<1x24x1xf32, #tpu.memory_space<vmem>>, %arg5: memref<3x256xf32, #tpu.memory_space<vmem>>, %arg6: memref<1x8x256xf32, #tpu.memory_space<vmem>>, %arg7: memref<8x290xf32, #tpu.memory_space<vmem>>, %arg8: memref<8x290xf32, #tpu.memory_space<vmem>>, %arg9: memref<9x256xf32, #tpu.memory_space<vmem>>, %arg10: memref<72x256xf32, #tpu.memory_space<vmem>>, %arg11: memref<72x9xf32, #tpu.memory_space<vmem>>) attributes {dimension_semantics = [#tpu.dimension_semantics<parallel>, #tpu.dimension_semantics<parallel>], iteration_bounds = array<i64: 2, 2>, scalar_prefetch = 0 : i64, scratch_operands = 5 : i64, tpu.core_type = #tpu.core_type<tc>, window_params = [{transform_indices = @transform_0, window_bounds = array<i64: 1, 16, 256>}, {transform_indices = @transform_1, window_bounds = array<i64: 1, 24, 16>}, {transform_indices = @transform_2, window_bounds = array<i64: 1, 24, 1>}, {pipeline_mode = #tpu.pipeline_mode<synchronous>, transform_indices = @transform_3, window_bounds = array<i64: 3, 256>}, {transform_indices = @transform_4, window_bounds = array<i64: 1, 8, 256>}]} {
    %c0 = arith.constant 0 : index
    %c0_0 = arith.constant 0 : index
    %c0_1 = arith.constant 0 : index
    %0 = vector.load %arg2[%c0, %c0_0, %c0_1] : memref<1x16x256xf32, #tpu.memory_space<vmem>>, vector<1x16x256xf32>
    %1 = vector.shape_cast %0 : vector<1x16x256xf32> to vector<16x256xf32>
    %c0_2 = arith.constant 0 : index
    %c0_3 = arith.constant 0 : index
    %c0_4 = arith.constant 0 : index
    %2 = vector.load %arg3[%c0_2, %c0_3, %c0_4] : memref<1x24x16xf32, #tpu.memory_space<vmem>>, vector<1x24x16xf32>
    %3 = vector.shape_cast %2 : vector<1x24x16xf32> to vector<24x16xf32>
    %cst = arith.constant dense<0.000000e+00> : vector<24x256xf32>
    %4 = tpu.matmul %3, %1, %cst {dimension_numbers = #tpu.dot_dimension_numbers<[1], [0], [0], [1], [0, 0, 1, 1], [], []>} : vector<24x16xf32>, vector<16x256xf32>, vector<24x256xf32> -> vector<24x256xf32>
    %c0_5 = arith.constant 0 : index
    %c0_6 = arith.constant 0 : index
    %c0_7 = arith.constant 0 : index
    %5 = vector.load %arg4[%c0_5, %c0_6, %c0_7] : memref<1x24x1xf32, #tpu.memory_space<vmem>>, vector<1x24x1xf32>
    %6 = vector.shape_cast %5 : vector<1x24x1xf32> to vector<24x1xf32>
    %7 = vector.broadcast %6 : vector<24x1xf32> to vector<24x256xf32>
    %8 = arith.addf %4, %7 : vector<24x256xf32>
    %9 = vector.extract_strided_slice %8 {offsets = [0, 0], sizes = [8, 256], strides = [1, 1]} : vector<24x256xf32> to vector<8x256xf32>
    %cst_8 = arith.constant 0.000000e+00 : f32
    %10 = vector.broadcast %cst_8 : f32 to vector<8x256xf32>
    %11 = arith.maximumf %9, %10 : vector<8x256xf32>
    %12 = vector.extract_strided_slice %8 {offsets = [8, 0], sizes = [8, 256], strides = [1, 1]} : vector<24x256xf32> to vector<8x256xf32>
    %cst_9 = arith.constant 0.000000e+00 : f32
    %13 = vector.broadcast %cst_9 : f32 to vector<8x256xf32>
    %14 = arith.maximumf %12, %13 : vector<8x256xf32>
    %15 = vector.extract_strided_slice %8 {offsets = [16, 0], sizes = [8, 256], strides = [1, 1]} : vector<24x256xf32> to vector<8x256xf32>
    %cst_10 = arith.constant 0.000000e+00 : f32
    %16 = vector.broadcast %cst_10 : f32 to vector<8x17xf32>
    %c0_11 = arith.constant 0 : index
    %c0_12 = arith.constant 0 : index
    %17 = vector.load %arg7[%c0_11, %c0_12] : memref<8x290xf32, #tpu.memory_space<vmem>>, vector<8x17xf32>
    tpu.vector_store %arg7[%c0_11, %c0_12], %16 {strides = array<i32>} : memref<8x290xf32, #tpu.memory_space<vmem>>, vector<8x17xf32>,
    %c0_13 = arith.constant 0 : index
    %c273 = arith.constant 273 : index
    %18 = vector.load %arg7[%c0_13, %c273] : memref<8x290xf32, #tpu.memory_space<vmem>>, vector<8x17xf32>
    tpu.vector_store %arg7[%c0_13, %c273], %16 {strides = array<i32>} : memref<8x290xf32, #tpu.memory_space<vmem>>, vector<8x17xf32>,
    %c0_14 = arith.constant 0 : index
    %c0_15 = arith.constant 0 : index
    %19 = vector.load %arg8[%c0_14, %c0_15] : memref<8x290xf32, #tpu.memory_space<vmem>>, vector<8x17xf32>
    tpu.vector_store %arg8[%c0_14, %c0_15], %16 {strides = array<i32>} : memref<8x290xf32, #tpu.memory_space<vmem>>, vector<8x17xf32>,
    %c0_16 = arith.constant 0 : index
    %c273_17 = arith.constant 273 : index
    %20 = vector.load %arg8[%c0_16, %c273_17] : memref<8x290xf32, #tpu.memory_space<vmem>>, vector<8x17xf32>
    tpu.vector_store %arg8[%c0_16, %c273_17], %16 {strides = array<i32>} : memref<8x290xf32, #tpu.memory_space<vmem>>, vector<8x17xf32>,
    %c0_18 = arith.constant 0 : index
    %c17 = arith.constant 17 : index
    %21 = vector.load %arg7[%c0_18, %c17] : memref<8x290xf32, #tpu.memory_space<vmem>>, vector<8x256xf32>
    tpu.vector_store %arg7[%c0_18, %c17], %11 {strides = array<i32>} : memref<8x290xf32, #tpu.memory_space<vmem>>, vector<8x256xf32>,
    %c0_19 = arith.constant 0 : index
    %c17_20 = arith.constant 17 : index
    %22 = vector.load %arg8[%c0_19, %c17_20] : memref<8x290xf32, #tpu.memory_space<vmem>>, vector<8x256xf32>
    tpu.vector_store %arg8[%c0_19, %c17_20], %14 {strides = array<i32>} : memref<8x290xf32, #tpu.memory_space<vmem>>, vector<8x256xf32>,
    %c0_21 = arith.constant 0 : index
    %c0_22 = arith.constant 0 : index
    %23 = vector.load %arg9[%c0_21, %c0_22] : memref<9x256xf32, #tpu.memory_space<vmem>>, vector<8x256xf32>
    tpu.vector_store %arg9[%c0_21, %c0_22], %15 {strides = array<i32>} : memref<9x256xf32, #tpu.memory_space<vmem>>, vector<8x256xf32>,
    %cst_23 = arith.constant 1.000000e+00 : f32
    %24 = vector.broadcast %cst_23 : f32 to vector<1x256xf32>
    %c8 = arith.constant 8 : index
    %c0_24 = arith.constant 0 : index
    %25 = vector.load %arg9[%c8, %c0_24] : memref<9x256xf32, #tpu.memory_space<vmem>>, vector<1x256xf32>
    tpu.vector_store %arg9[%c8, %c0_24], %24 {strides = array<i32>} : memref<9x256xf32, #tpu.memory_space<vmem>>, vector<1x256xf32>,
    %c0_25 = arith.constant 0 : index
    %c0_26 = arith.constant 0 : index
    %26 = vector.load %arg9[%c0_25, %c0_26] : memref<9x256xf32, #tpu.memory_space<vmem>>, vector<9x256xf32>
    %c0_27 = arith.constant 0 : index
    %c0_28 = arith.constant 0 : index
    %27 = vector.load %arg7[%c0_27, %c0_28] : memref<8x290xf32, #tpu.memory_space<vmem>>, vector<8x256xf32>
    %c0_29 = arith.constant 0 : index
    %c0_30 = arith.constant 0 : index
    %28 = vector.load %arg8[%c0_29, %c0_30] : memref<8x290xf32, #tpu.memory_space<vmem>>, vector<8x256xf32>
    %c0_31 = arith.constant 0 : index
    %c0_32 = arith.constant 0 : index
    %29 = vector.load %arg5[%c0_31, %c0_32] : memref<3x256xf32, #tpu.memory_space<vmem>>, vector<1x256xf32>
    %30 = vector.broadcast %29 : vector<1x256xf32> to vector<8x256xf32>
    %31 = arith.mulf %27, %30 : vector<8x256xf32>
    %32 = vector.broadcast %29 : vector<1x256xf32> to vector<8x256xf32>
    %33 = arith.mulf %28, %32 : vector<8x256xf32>
    %c0_33 = arith.constant 0 : index
    %c0_34 = arith.constant 0 : index
    %34 = vector.load %arg10[%c0_33, %c0_34] : memref<72x256xf32, #tpu.memory_space<vmem>>, vector<8x256xf32>
    tpu.vector_store %arg10[%c0_33, %c0_34], %31 {strides = array<i32>} : memref<72x256xf32, #tpu.memory_space<vmem>>, vector<8x256xf32>,
    %cst_35 = arith.constant dense<0.000000e+00> : vector<8x9xf32>
    %35 = tpu.matmul %33, %26, %cst_35 {dimension_numbers = #tpu.dot_dimension_numbers<[1], [1], [0], [0], [0, 0, 1, 0], [], []>} : vector<8x256xf32>, vector<9x256xf32>, vector<8x9xf32> -> vector<8x9xf32>
    %c0_36 = arith.constant 0 : index
    %c0_37 = arith.constant 0 : index
    %36 = vector.load %arg11[%c0_36, %c0_37] : memref<72x9xf32, #tpu.memory_space<vmem>>, vector<8x9xf32>
    tpu.vector_store %arg11[%c0_36, %c0_37], %35 {strides = array<i32>} : memref<72x9xf32, #tpu.memory_space<vmem>>, vector<8x9xf32>,
    %c0_38 = arith.constant 0 : index
    %c1 = arith.constant 1 : index
    %37 = vector.load %arg7[%c0_38, %c1] : memref<8x290xf32, #tpu.memory_space<vmem>>, vector<8x256xf32>
    %c0_39 = arith.constant 0 : index
    %c1_40 = arith.constant 1 : index
    %38 = vector.load %arg8[%c0_39, %c1_40] : memref<8x290xf32, #tpu.memory_space<vmem>>, vector<8x256xf32>
    %c8_41 = arith.constant 8 : index
    %c0_42 = arith.constant 0 : index
    %39 = vector.load %arg10[%c8_41, %c0_42] : memref<72x256xf32, #tpu.memory_space<vmem>>, vector<8x256xf32>
    tpu.vector_store %arg10[%c8_41, %c0_42], %37 {strides = array<i32>} : memref<72x256xf32, #tpu.memory_space<vmem>>, vector<8x256xf32>,
    %cst_43 = arith.constant dense<0.000000e+00> : vector<8x9xf32>
    %40 = tpu.matmul %38, %26, %cst_43 {dimension_numbers = #tpu.dot_dimension_numbers<[1], [1], [0], [0], [0, 0, 1, 0], [], []>} : vector<8x256xf32>, vector<9x256xf32>, vector<8x9xf32> -> vector<8x9xf32>
    %c8_44 = arith.constant 8 : index
    %c0_45 = arith.constant 0 : index
    %41 = vector.load %arg11[%c8_44, %c0_45] : memref<72x9xf32, #tpu.memory_space<vmem>>, vector<8x9xf32>
    tpu.vector_store %arg11[%c8_44, %c0_45], %40 {strides = array<i32>} : memref<72x9xf32, #tpu.memory_space<vmem>>, vector<8x9xf32>,
    %c0_46 = arith.constant 0 : index
    %c2 = arith.constant 2 : index
    %42 = vector.load %arg7[%c0_46, %c2] : memref<8x290xf32, #tpu.memory_space<vmem>>, vector<8x256xf32>
    %c0_47 = arith.constant 0 : index
    %c2_48 = arith.constant 2 : index
    %43 = vector.load %arg8[%c0_47, %c2_48] : memref<8x290xf32, #tpu.memory_space<vmem>>, vector<8x256xf32>
    %c2_49 = arith.constant 2 : index
    %c0_50 = arith.constant 0 : index
    %44 = vector.load %arg5[%c2_49, %c0_50] : memref<3x256xf32, #tpu.memory_space<vmem>>, vector<1x256xf32>
    %45 = vector.broadcast %44 : vector<1x256xf32> to vector<8x256xf32>
    %46 = arith.mulf %42, %45 : vector<8x256xf32>
    %47 = vector.broadcast %44 : vector<1x256xf32> to vector<8x256xf32>
    %48 = arith.mulf %43, %47 : vector<8x256xf32>
    %c16 = arith.constant 16 : index
    %c0_51 = arith.constant 0 : index
    %49 = vector.load %arg10[%c16, %c0_51] : memref<72x256xf32, #tpu.memory_space<vmem>>, vector<8x256xf32>
    tpu.vector_store %arg10[%c16, %c0_51], %46 {strides = array<i32>} : memref<72x256xf32, #tpu.memory_space<vmem>>, vector<8x256xf32>,
    %cst_52 = arith.constant dense<0.000000e+00> : vector<8x9xf32>
    %50 = tpu.matmul %48, %26, %cst_52 {dimension_numbers = #tpu.dot_dimension_numbers<[1], [1], [0], [0], [0, 0, 1, 0], [], []>} : vector<8x256xf32>, vector<9x256xf32>, vector<8x9xf32> -> vector<8x9xf32>
    %c16_53 = arith.constant 16 : index
    %c0_54 = arith.constant 0 : index
    %51 = vector.load %arg11[%c16_53, %c0_54] : memref<72x9xf32, #tpu.memory_space<vmem>>, vector<8x9xf32>
    tpu.vector_store %arg11[%c16_53, %c0_54], %50 {strides = array<i32>} : memref<72x9xf32, #tpu.memory_space<vmem>>, vector<8x9xf32>,
    %c0_55 = arith.constant 0 : index
    %c16_56 = arith.constant 16 : index
    %52 = vector.load %arg7[%c0_55, %c16_56] : memref<8x290xf32, #tpu.memory_space<vmem>>, vector<8x256xf32>
    %c0_57 = arith.constant 0 : index
    %c16_58 = arith.constant 16 : index
    %53 = vector.load %arg8[%c0_57, %c16_58] : memref<8x290xf32, #tpu.memory_space<vmem>>, vector<8x256xf32>
    %c0_59 = arith.constant 0 : index
    %c0_60 = arith.constant 0 : index
    %54 = vector.load %arg5[%c0_59, %c0_60] : memref<3x256xf32, #tpu.memory_space<vmem>>, vector<1x256xf32>
    %55 = vector.broadcast %54 : vector<1x256xf32> to vector<8x256xf32>
    %56 = arith.mulf %52, %55 : vector<8x256xf32>
    %57 = vector.broadcast %54 : vector<1x256xf32> to vector<8x256xf32>
    %58 = arith.mulf %53, %57 : vector<8x256xf32>
    %c24 = arith.constant 24 : index
    %c0_61 = arith.constant 0 : index
    %59 = vector.load %arg10[%c24, %c0_61] : memref<72x256xf32, #tpu.memory_space<vmem>>, vector<8x256xf32>
    tpu.vector_store %arg10[%c24, %c0_61], %56 {strides = array<i32>} : memref<72x256xf32, #tpu.memory_space<vmem>>, vector<8x256xf32>,
    %cst_62 = arith.constant dense<0.000000e+00> : vector<8x9xf32>
    %60 = tpu.matmul %58, %26, %cst_62 {dimension_numbers = #tpu.dot_dimension_numbers<[1], [1], [0], [0], [0, 0, 1, 0], [], []>} : vector<8x256xf32>, vector<9x256xf32>, vector<8x9xf32> -> vector<8x9xf32>
    %c24_63 = arith.constant 24 : index
    %c0_64 = arith.constant 0 : index
    %61 = vector.load %arg11[%c24_63, %c0_64] : memref<72x9xf32, #tpu.memory_space<vmem>>, vector<8x9xf32>
    tpu.vector_store %arg11[%c24_63, %c0_64], %60 {strides = array<i32>} : memref<72x9xf32, #tpu.memory_space<vmem>>, vector<8x9xf32>,
    %c0_65 = arith.constant 0 : index
    %c17_66 = arith.constant 17 : index
    %62 = vector.load %arg7[%c0_65, %c17_66] : memref<8x290xf32, #tpu.memory_space<vmem>>, vector<8x256xf32>
    %c0_67 = arith.constant 0 : index
    %c17_68 = arith.constant 17 : index
    %63 = vector.load %arg8[%c0_67, %c17_68] : memref<8x290xf32, #tpu.memory_space<vmem>>, vector<8x256xf32>
    %c32 = arith.constant 32 : index
    %c0_69 = arith.constant 0 : index
    %64 = vector.load %arg10[%c32, %c0_69] : memref<72x256xf32, #tpu.memory_space<vmem>>, vector<8x256xf32>
    tpu.vector_store %arg10[%c32, %c0_69], %62 {strides = array<i32>} : memref<72x256xf32, #tpu.memory_space<vmem>>, vector<8x256xf32>,
    %cst_70 = arith.constant dense<0.000000e+00> : vector<8x9xf32>
    %65 = tpu.matmul %63, %26, %cst_70 {dimension_numbers = #tpu.dot_dimension_numbers<[1], [1], [0], [0], [0, 0, 1, 0], [], []>} : vector<8x256xf32>, vector<9x256xf32>, vector<8x9xf32> -> vector<8x9xf32>
    %c32_71 = arith.constant 32 : index
    %c0_72 = arith.constant 0 : index
    %66 = vector.load %arg11[%c32_71, %c0_72] : memref<72x9xf32, #tpu.memory_space<vmem>>, vector<8x9xf32>
    tpu.vector_store %arg11[%c32_71, %c0_72], %65 {strides = array<i32>} : memref<72x9xf32, #tpu.memory_space<vmem>>, vector<8x9xf32>,
    %c0_73 = arith.constant 0 : index
    %c18 = arith.constant 18 : index
    %67 = vector.load %arg7[%c0_73, %c18] : memref<8x290xf32, #tpu.memory_space<vmem>>, vector<8x256xf32>
    %c0_74 = arith.constant 0 : index
    %c18_75 = arith.constant 18 : index
    %68 = vector.load %arg8[%c0_74, %c18_75] : memref<8x290xf32, #tpu.memory_space<vmem>>, vector<8x256xf32>
    %c2_76 = arith.constant 2 : index
    %c0_77 = arith.constant 0 : index
    %69 = vector.load %arg5[%c2_76, %c0_77] : memref<3x256xf32, #tpu.memory_space<vmem>>, vector<1x256xf32>
    %70 = vector.broadcast %69 : vector<1x256xf32> to vector<8x256xf32>
    %71 = arith.mulf %67, %70 : vector<8x256xf32>
    %72 = vector.broadcast %69 : vector<1x256xf32> to vector<8x256xf32>
    %73 = arith.mulf %68, %72 : vector<8x256xf32>
    %c40 = arith.constant 40 : index
    %c0_78 = arith.constant 0 : index
    %74 = vector.load %arg10[%c40, %c0_78] : memref<72x256xf32, #tpu.memory_space<vmem>>, vector<8x256xf32>
    tpu.vector_store %arg10[%c40, %c0_78], %71 {strides = array<i32>} : memref<72x256xf32, #tpu.memory_space<vmem>>, vector<8x256xf32>,
    %cst_79 = arith.constant dense<0.000000e+00> : vector<8x9xf32>
    %75 = tpu.matmul %73, %26, %cst_79 {dimension_numbers = #tpu.dot_dimension_numbers<[1], [1], [0], [0], [0, 0, 1, 0], [], []>} : vector<8x256xf32>, vector<9x256xf32>, vector<8x9xf32> -> vector<8x9xf32>
    %c40_80 = arith.constant 40 : index
    %c0_81 = arith.constant 0 : index
    %76 = vector.load %arg11[%c40_80, %c0_81] : memref<72x9xf32, #tpu.memory_space<vmem>>, vector<8x9xf32>
    tpu.vector_store %arg11[%c40_80, %c0_81], %75 {strides = array<i32>} : memref<72x9xf32, #tpu.memory_space<vmem>>, vector<8x9xf32>,
    %c0_82 = arith.constant 0 : index
    %c32_83 = arith.constant 32 : index
    %77 = vector.load %arg7[%c0_82, %c32_83] : memref<8x290xf32, #tpu.memory_space<vmem>>, vector<8x256xf32>
    %c0_84 = arith.constant 0 : index
    %c32_85 = arith.constant 32 : index
    %78 = vector.load %arg8[%c0_84, %c32_85] : memref<8x290xf32, #tpu.memory_space<vmem>>, vector<8x256xf32>
    %c0_86 = arith.constant 0 : index
    %c0_87 = arith.constant 0 : index
    %79 = vector.load %arg5[%c0_86, %c0_87] : memref<3x256xf32, #tpu.memory_space<vmem>>, vector<1x256xf32>
    %80 = vector.broadcast %79 : vector<1x256xf32> to vector<8x256xf32>
    %81 = arith.mulf %77, %80 : vector<8x256xf32>
    %82 = vector.broadcast %79 : vector<1x256xf32> to vector<8x256xf32>
    %83 = arith.mulf %78, %82 : vector<8x256xf32>
    %c48 = arith.constant 48 : index
    %c0_88 = arith.constant 0 : index
    %84 = vector.load %arg10[%c48, %c0_88] : memref<72x256xf32, #tpu.memory_space<vmem>>, vector<8x256xf32>
    tpu.vector_store %arg10[%c48, %c0_88], %81 {strides = array<i32>} : memref<72x256xf32, #tpu.memory_space<vmem>>, vector<8x256xf32>,
    %cst_89 = arith.constant dense<0.000000e+00> : vector<8x9xf32>
    %85 = tpu.matmul %83, %26, %cst_89 {dimension_numbers = #tpu.dot_dimension_numbers<[1], [1], [0], [0], [0, 0, 1, 0], [], []>} : vector<8x256xf32>, vector<9x256xf32>, vector<8x9xf32> -> vector<8x9xf32>
    %c48_90 = arith.constant 48 : index
    %c0_91 = arith.constant 0 : index
    %86 = vector.load %arg11[%c48_90, %c0_91] : memref<72x9xf32, #tpu.memory_space<vmem>>, vector<8x9xf32>
    tpu.vector_store %arg11[%c48_90, %c0_91], %85 {strides = array<i32>} : memref<72x9xf32, #tpu.memory_space<vmem>>, vector<8x9xf32>,
    %c0_92 = arith.constant 0 : index
    %c33 = arith.constant 33 : index
    %87 = vector.load %arg7[%c0_92, %c33] : memref<8x290xf32, #tpu.memory_space<vmem>>, vector<8x256xf32>
    %c0_93 = arith.constant 0 : index
    %c33_94 = arith.constant 33 : index
    %88 = vector.load %arg8[%c0_93, %c33_94] : memref<8x290xf32, #tpu.memory_space<vmem>>, vector<8x256xf32>
    %c56 = arith.constant 56 : index
    %c0_95 = arith.constant 0 : index
    %89 = vector.load %arg10[%c56, %c0_95] : memref<72x256xf32, #tpu.memory_space<vmem>>, vector<8x256xf32>
    tpu.vector_store %arg10[%c56, %c0_95], %87 {strides = array<i32>} : memref<72x256xf32, #tpu.memory_space<vmem>>, vector<8x256xf32>,
    %cst_96 = arith.constant dense<0.000000e+00> : vector<8x9xf32>
    %90 = tpu.matmul %88, %26, %cst_96 {dimension_numbers = #tpu.dot_dimension_numbers<[1], [1], [0], [0], [0, 0, 1, 0], [], []>} : vector<8x256xf32>, vector<9x256xf32>, vector<8x9xf32> -> vector<8x9xf32>
    %c56_97 = arith.constant 56 : index
    %c0_98 = arith.constant 0 : index
    %91 = vector.load %arg11[%c56_97, %c0_98] : memref<72x9xf32, #tpu.memory_space<vmem>>, vector<8x9xf32>
    tpu.vector_store %arg11[%c56_97, %c0_98], %90 {strides = array<i32>} : memref<72x9xf32, #tpu.memory_space<vmem>>, vector<8x9xf32>,
    %c0_99 = arith.constant 0 : index
    %c34 = arith.constant 34 : index
    %92 = vector.load %arg7[%c0_99, %c34] : memref<8x290xf32, #tpu.memory_space<vmem>>, vector<8x256xf32>
    %c0_100 = arith.constant 0 : index
    %c34_101 = arith.constant 34 : index
    %93 = vector.load %arg8[%c0_100, %c34_101] : memref<8x290xf32, #tpu.memory_space<vmem>>, vector<8x256xf32>
    %c2_102 = arith.constant 2 : index
    %c0_103 = arith.constant 0 : index
    %94 = vector.load %arg5[%c2_102, %c0_103] : memref<3x256xf32, #tpu.memory_space<vmem>>, vector<1x256xf32>
    %95 = vector.broadcast %94 : vector<1x256xf32> to vector<8x256xf32>
    %96 = arith.mulf %92, %95 : vector<8x256xf32>
    %97 = vector.broadcast %94 : vector<1x256xf32> to vector<8x256xf32>
    %98 = arith.mulf %93, %97 : vector<8x256xf32>
    %c64 = arith.constant 64 : index
    %c0_104 = arith.constant 0 : index
    %99 = vector.load %arg10[%c64, %c0_104] : memref<72x256xf32, #tpu.memory_space<vmem>>, vector<8x256xf32>
    tpu.vector_store %arg10[%c64, %c0_104], %96 {strides = array<i32>} : memref<72x256xf32, #tpu.memory_space<vmem>>, vector<8x256xf32>,
    %cst_105 = arith.constant dense<0.000000e+00> : vector<8x9xf32>
    %100 = tpu.matmul %98, %26, %cst_105 {dimension_numbers = #tpu.dot_dimension_numbers<[1], [1], [0], [0], [0, 0, 1, 0], [], []>} : vector<8x256xf32>, vector<9x256xf32>, vector<8x9xf32> -> vector<8x9xf32>
    %c64_106 = arith.constant 64 : index
    %c0_107 = arith.constant 0 : index
    %101 = vector.load %arg11[%c64_106, %c0_107] : memref<72x9xf32, #tpu.memory_space<vmem>>, vector<8x9xf32>
    tpu.vector_store %arg11[%c64_106, %c0_107], %100 {strides = array<i32>} : memref<72x9xf32, #tpu.memory_space<vmem>>, vector<8x9xf32>,
    %c0_108 = arith.constant 0 : index
    %c0_109 = arith.constant 0 : index
    %102 = vector.load %arg11[%c0_108, %c0_109] : memref<72x9xf32, #tpu.memory_space<vmem>>, vector<72x9xf32>
    %c0_110 = arith.constant 0 : index
    %c0_111 = arith.constant 0 : index
    %103 = vector.load %arg10[%c0_110, %c0_111] : memref<72x256xf32, #tpu.memory_space<vmem>>, vector<72x256xf32>
    %cst_112 = arith.constant dense<0.000000e+00> : vector<9x256xf32>
    %104 = tpu.matmul %102, %103, %cst_112 {dimension_numbers = #tpu.dot_dimension_numbers<[0], [0], [1], [1], [0, 1, 1, 1], [], []>} : vector<72x9xf32>, vector<72x256xf32>, vector<9x256xf32> -> vector<9x256xf32>
    %105 = vector.extract_strided_slice %104 {offsets = [0, 0], sizes = [8, 256], strides = [1, 1]} : vector<9x256xf32> to vector<8x256xf32>
    %106 = vector.extract_strided_slice %104 {offsets = [8, 0], sizes = [1, 256], strides = [1, 1]} : vector<9x256xf32> to vector<1x256xf32>
    %cst_113 = arith.constant 9.99999997E-7 : f32
    %107 = vector.broadcast %cst_113 : f32 to vector<1x256xf32>
    %108 = arith.addf %106, %107 : vector<1x256xf32>
    %109 = tpu.reciprocal %108 : vector<1x256xf32> -> vector<1x256xf32>
    %110 = vector.broadcast %109 : vector<1x256xf32> to vector<8x256xf32>
    %111 = arith.mulf %105, %110 : vector<8x256xf32>
    %c0_114 = arith.constant 0 : index
    %c0_115 = arith.constant 0 : index
    %c0_116 = arith.constant 0 : index
    %112 = vector.load %arg6[%c0_114, %c0_115, %c0_116] : memref<1x8x256xf32, #tpu.memory_space<vmem>>, vector<1x8x256xf32>
    %113 = vector.shape_cast %112 : vector<1x8x256xf32> to vector<8x256xf32>
    %114 = vector.shape_cast %111 : vector<8x256xf32> to vector<1x8x256xf32>
    tpu.vector_store %arg6[%c0_114, %c0_115, %c0_116], %114 {strides = array<i32>} : memref<1x8x256xf32, #tpu.memory_space<vmem>>, vector<1x8x256xf32>,
    return
  }
  func.func @transform_0(%arg0: i32, %arg1: i32) -> (i32, i32, i32) {
    %c0_i32 = arith.constant 0 : i32
    %c0_i32_0 = arith.constant 0 : i32
    %c0_i32_1 = arith.constant 0 : i32
    return %arg0, %c0_i32, %c0_i32_0 : i32, i32, i32
  }
  func.func @transform_1(%arg0: i32, %arg1: i32) -> (i32, i32, i32) {
    %c0_i32 = arith.constant 0 : i32
    %c0_i32_0 = arith.constant 0 : i32
    %c0_i32_1 = arith.constant 0 : i32
    return %arg1, %c0_i32, %c0_i32_0 : i32, i32, i32
  }
  func.func @transform_2(%arg0: i32, %arg1: i32) -> (i32, i32, i32) {
    %c0_i32 = arith.constant 0 : i32
    %c0_i32_0 = arith.constant 0 : i32
    %c0_i32_1 = arith.constant 0 : i32
    return %arg1, %c0_i32, %c0_i32_0 : i32, i32, i32
  }
  func.func @transform_3(%arg0: i32, %arg1: i32) -> (i32, i32) {
    %c0_i32 = arith.constant 0 : i32
    %c0_i32_0 = arith.constant 0 : i32
    %c0_i32_1 = arith.constant 0 : i32
    return %c0_i32, %c0_i32_0 : i32, i32
  }
  func.func @transform_4(%arg0: i32, %arg1: i32) -> (i32, i32, i32) {
    %c0_i32 = arith.constant 0 : i32
    %c0_i32_0 = arith.constant 0 : i32
    return %arg0, %arg1, %c0_i32 : i32, i32, i32
  }
}

</mosaic_0001>

<llo_original>
// kernel: tpu_custom_call.1
$region0: #{tpu_custom_call.1}
  #allocation0 [shape = 'u32[]', space=smem, size = 0x4, offset = 0x4, fixed_abs, tag = 'smem constant byte address 0x4 - core index']
  #allocation1 [shape = 'u32[72,128]{1,0:T(1,128)}', space=vmem, size = 0x9000, scoped, tag = 'internal scratch']
  #allocation2 [shape = 'f32[8,290]{1,0:T(8,128)}', space=vmem, size = 0x3000, scoped, tag = 'scratch operand']
  #allocation3 [shape = 'f32[8,290]{1,0:T(8,128)}', space=vmem, size = 0x3000, scoped, tag = 'scratch operand']
  #allocation4 [shape = 'f32[9,256]{1,0:T(8,128)}', space=vmem, size = 0x4000, scoped, tag = 'scratch operand']
  #allocation5 [shape = 'f32[72,256]{1,0:T(8,128)}', space=vmem, size = 0x12000, scoped, tag = 'scratch operand']
  #allocation6 [shape = 'f32[72,9]{1,0:T(8,128)}', space=vmem, size = 0x9000, scoped, tag = 'scratch operand']
  %s0 = inlined_call_operand.vmem [shape: f32[2,16,256], index: 0, kind: input, shape index: {}]
  %s1 = inlined_call_operand.vmem [shape: f32[2,24,16], index: 1, kind: input, shape index: {}]
  %s2 = inlined_call_operand.vmem [shape: f32[2,24,1], index: 2, kind: input, shape index: {}]
  %s3 = inlined_call_operand.vmem [shape: f32[3,256], index: 3, kind: input, shape index: {}]
  %s4 = inlined_call_operand.hbm [shape: f32[2,16,256], index: 4, kind: output, shape index: {}]
  %s5 = sld [smem:[#allocation0]]
  $region49: #{tpu_custom_call.1} parent=0
    _
  %s7 = ssub.s32 1, %s5
  %s8 = scalar_select 0, %s7, %s5
  $region1: #{tpu_custom_call.1} parent=0
    #allocation7 [shape = 'u8[16384]{0}', space=vmem, size = 0x4000, scoped, tag = 'output window, operand 0']
    #allocation8 [shape = 's32[2]{0}', space=sflag, size = 0x8, scoped, tag = 'scoped memory for tpu_custom_call.1']
    %9 = vsyncpa [#allocation8], 0
    %s10 = scalar_lea.sflag [#allocation8], 1
    %11 = vsyncpa %s10, 0
    loop: start=0, step=1, limit=6
    $region2: #{tpu_custom_call.1} parent=1 // loop_pre_header
      _
    $region3: #{tpu_custom_call.1} parent=1 // loop_header
      %s13 = sphi 0, %s17
      %p14 = scmp.ge.s32.totalorder %s13, 6
      %s20 = sphi 0, %s32
      %s21 = sphi 0, %s28
      %s22 = sphi 0, %s20
      %s23 = sphi 0, %s21
      %s24 = sphi 0, %s22
      %s25 = sphi 0, %s23
      %s35 = sphi 0, %s37
      %s38 = sphi 0, %s35
      %s39 = sphi 0, %s38
      %s55 = sphi 0, %s39
      %s61 = sphi 0, %s63
      %s64 = sphi 0, %s61
      %s65 = sphi 0, %s64
      %s81 = sphi 0, %s65
      %s87 = sphi 0, %s89
      %s90 = sphi 0, %s87
      %s91 = sphi 0, %s90
      %s107 = sphi 0, %s91
      %s111 = sphi 0, %s111
      %s113 = sphi 0, %s111
      %s114 = sphi 0, %s113
      %s128 = sphi 0, %s114
      %s136 = sphi 0, %s138
      %s139 = sphi 0, %s136
      %s140 = sphi 0, %s139
      %s156 = sphi 0, %s140
    $region4: #{tpu_custom_call.1} parent=1 // loop_header_branch
      %16 = sbr.rel (%p14) target = $region8
    $region5: #{tpu_custom_call.1} parent=1 // loop_body
      %s18 = ssub.s32 %s13, 1
      %s19 = ssub.s32 %s13, 2
      %s26 = sadd.s32 1, %s21
      %p27 = scmp.ge.s32.totalorder %s26, 2
      %s28 = scalar_select %p27, 0, %s26
      %s29 = sadd.s32 1, %s20
      %s30 = scalar_select %p27, %s29, %s20
      %p31 = scmp.ge.s32.totalorder %s30, 2
      %s32 = scalar_select %p31, 0, %s30
      %s33 = ssub.s32 %s20, %s32
      %p34 = scmp.eq.s32.totalorder %s33, 0
      %s36 = sadd.s32 %s35, 1
      %s37 = scalar_select %p34, %s35, %s36
      %p40 = pneg %p34
      %p41 = scmp.eq.s32.totalorder %s13, 3
      %p42 = por %p40, %p41
      %p43 = scmp.ne.s32.totalorder %s35, %s38
      %p44 = scmp.eq.s32.totalorder %s13, 0
      %p45 = por %p43, %p44
      %p46 = scmp.ne.s32.totalorder %s35, %s38
      %p47 = scmp.eq.s32.totalorder %s18, 3
      %p48 = por %p46, %p47
      %p49 = scmp.ne.s32.totalorder %s38, %s39
      %p50 = scmp.eq.s32.totalorder %s18, 0
      %p51 = por %p49, %p50
      %p52 = scmp.ne.s32.totalorder %s38, %s39
      %p53 = scmp.eq.s32.totalorder %s19, 3
      %p54 = por %p52, %p53
      %p56 = scmp.ne.s32.totalorder %s39, %s55
      %p57 = scmp.eq.s32.totalorder %s19, 0
      %p58 = por %p56, %p57
      %s59 = ssub.s32 %s21, %s28
      %p60 = scmp.eq.s32.totalorder %s59, 0
      %s62 = sadd.s32 %s61, 1
      %s63 = scalar_select %p60, %s61, %s62
      %p66 = pneg %p60
      %p67 = scmp.eq.s32.totalorder %s13, 3
      %p68 = por %p66, %p67
      %p69 = scmp.ne.s32.totalorder %s61, %s64
      %p70 = scmp.eq.s32.totalorder %s13, 0
      %p71 = por %p69, %p70
      %p72 = scmp.ne.s32.totalorder %s61, %s64
      %p73 = scmp.eq.s32.totalorder %s18, 3
      %p74 = por %p72, %p73
      %p75 = scmp.ne.s32.totalorder %s64, %s65
      %p76 = scmp.eq.s32.totalorder %s18, 0
      %p77 = por %p75, %p76
      %p78 = scmp.ne.s32.totalorder %s64, %s65
      %p79 = scmp.eq.s32.totalorder %s19, 3
      %p80 = por %p78, %p79
      %p82 = scmp.ne.s32.totalorder %s65, %s81
      %p83 = scmp.eq.s32.totalorder %s19, 0
      %p84 = por %p82, %p83
      %s85 = ssub.s32 %s21, %s28
      %p86 = scmp.eq.s32.totalorder %s85, 0
      %s88 = sadd.s32 %s87, 1
      %s89 = scalar_select %p86, %s87, %s88
      %p92 = pneg %p86
      %p93 = scmp.eq.s32.totalorder %s13, 3
      %p94 = por %p92, %p93
      %p95 = scmp.ne.s32.totalorder %s87, %s90
      %p96 = scmp.eq.s32.totalorder %s13, 0
      %p97 = por %p95, %p96
      %p98 = scmp.ne.s32.totalorder %s87, %s90
      %p99 = scmp.eq.s32.totalorder %s18, 3
      %p100 = por %p98, %p99
      %p101 = scmp.ne.s32.totalorder %s90, %s91
      %p102 = scmp.eq.s32.totalorder %s18, 0
      %p103 = por %p101, %p102
      %p104 = scmp.ne.s32.totalorder %s90, %s91
      %p105 = scmp.eq.s32.totalorder %s19, 3
      %p106 = por %p104, %p105
      %p108 = scmp.ne.s32.totalorder %s91, %s107
      %p109 = scmp.eq.s32.totalorder %s19, 0
      %p110 = por %p108, %p109
      %s112 = sadd.s32 %s111, 1
      %p115 = scmp.eq.s32.totalorder %s13, 3
      %p116 = scmp.ne.s32.totalorder %s111, %s113
      %p117 = scmp.eq.s32.totalorder %s13, 0
      %p118 = por %p116, %p117
      %p119 = scmp.ne.s32.totalorder %s111, %s113
      %p120 = scmp.eq.s32.totalorder %s18, 3
      %p121 = por %p119, %p120
      %p122 = scmp.ne.s32.totalorder %s113, %s114
      %p123 = scmp.eq.s32.totalorder %s18, 0
      %p124 = por %p122, %p123
      %p125 = scmp.ne.s32.totalorder %s113, %s114
      %p126 = scmp.eq.s32.totalorder %s19, 3
      %p127 = por %p125, %p126
      %p129 = scmp.ne.s32.totalorder %s114, %s128
      %p130 = scmp.eq.s32.totalorder %s19, 0
      %p131 = por %p129, %p130
      %s132 = ssub.s32 %s20, %s32
      %s133 = ssub.s32 %s21, %s28
      %s134 = sor.u32 %s132, %s133
      %p135 = scmp.eq.s32.totalorder %s134, 0
      %s137 = sadd.s32 %s136, 1
      %s138 = scalar_select %p135, %s136, %s137
      %p141 = pneg %p135
      %p142 = scmp.eq.s32.totalorder %s13, 3
      %p143 = por %p141, %p142
      %p144 = scmp.ne.s32.totalorder %s136, %s139
      %p145 = scmp.eq.s32.totalorder %s13, 0
      %p146 = por %p144, %p145
      %p147 = scmp.ne.s32.totalorder %s136, %s139
      %p148 = scmp.eq.s32.totalorder %s18, 3
      %p149 = por %p147, %p148
      %p150 = scmp.ne.s32.totalorder %s139, %s140
      %p151 = scmp.eq.s32.totalorder %s18, 0
      %p152 = por %p150, %p151
      %p153 = scmp.ne.s32.totalorder %s139, %s140
      %p154 = scmp.eq.s32.totalorder %s19, 3
      %p155 = por %p153, %p154
      %p157 = scmp.ne.s32.totalorder %s140, %s156
      %p158 = scmp.eq.s32.totalorder %s19, 0
      %p159 = por %p157, %p158
      %p160 = scmp.le.s32.totalorder 1, %s13
      %p161 = scmp.lt.s32.totalorder %s13, 5
      %p162 = pnand %p160, %p161
      %p163 = pneg %p162
      // Predicated region
      $region9: #{tpu_custom_call.1} parent=5 // pred_check
        _
      $region10: #{tpu_custom_call.1} parent=5 // pred_check_branch
        %165 = sbr.rel (%p162) target = $region12
      $region11: #{tpu_custom_call.1} parent=5 // pred_region
        %s166 = ssub.s32 %s13, 1
        // Predicated region
        $region13: #{tpu_custom_call.1} parent=11 // pred_check
          %p167 = pneg %p124
        $region14: #{tpu_custom_call.1} parent=11 // pred_check_branch
          %169 = sbr.rel (%p167) target = $region16
        $region15: #{tpu_custom_call.1} parent=11 // pred_region
          _
        $region16: #{tpu_custom_call.1} parent=11 // pred_fallthru
          _
      $region12: #{tpu_custom_call.1} parent=5 // pred_fallthru
        _
      %p170 = scmp.lt.s32.totalorder %s13, 4
      // Predicated region
      $region17: #{tpu_custom_call.1} parent=5 // pred_check
        %p171 = pneg %p170
      $region18: #{tpu_custom_call.1} parent=5 // pred_check_branch
        %173 = sbr.rel (%p171) target = $region20
      $region19: #{tpu_custom_call.1} parent=5 // pred_region
        // Predicated region
        $region21: #{tpu_custom_call.1} parent=19 // pred_check
          %p174 = pneg %p45
        $region22: #{tpu_custom_call.1} parent=19 // pred_check_branch
          %176 = sbr.rel (%p174) target = $region24
        $region23: #{tpu_custom_call.1} parent=19 // pred_region
          %p177 = scmp.lt.s32.totalorder %s20, 1
          %s178 = scalar_select %p177, %s20, 1
          %s179 = smul.addr %s178, 4
          %s180 = smul.addr %s179, 8
          %s181 = scalar_lea.vmem %s0, %s180
        $region24: #{tpu_custom_call.1} parent=19 // pred_fallthru
          _
        // Predicated region
        $region25: #{tpu_custom_call.1} parent=19 // pred_check
          %p182 = pneg %p71
        $region26: #{tpu_custom_call.1} parent=19 // pred_check_branch
          %184 = sbr.rel (%p182) target = $region28
        $region27: #{tpu_custom_call.1} parent=19 // pred_region
          %p185 = scmp.lt.s32.totalorder %s21, 1
          %s186 = scalar_select %p185, %s21, 1
          %s187 = smul.addr %s186, 3
          %s188 = smul.addr %s187, 8
          %s189 = scalar_lea.vmem %s1, %s188
        $region28: #{tpu_custom_call.1} parent=19 // pred_fallthru
          _
        // Predicated region
        $region29: #{tpu_custom_call.1} parent=19 // pred_check
          %p190 = pneg %p97
        $region30: #{tpu_custom_call.1} parent=19 // pred_check_branch
          %192 = sbr.rel (%p190) target = $region32
        $region31: #{tpu_custom_call.1} parent=19 // pred_region
          %p193 = scmp.lt.s32.totalorder %s21, 1
          %s194 = scalar_select %p193, %s21, 1
          %s195 = smul.addr %s194, 3
          %s196 = smul.addr %s195, 8
          %s197 = scalar_lea.vmem %s2, %s196
        $region32: #{tpu_custom_call.1} parent=19 // pred_fallthru
          _
      $region20: #{tpu_custom_call.1} parent=5 // pred_fallthru
        _
      %p198 = scmp.le.s32.totalorder 1, %s13
      %p199 = scmp.lt.s32.totalorder %s13, 5
      %p200 = pnand %p198, %p199
      %p201 = pneg %p200
      // Predicated region
      $region33: #{tpu_custom_call.1} parent=5 // pred_check
        _
      $region34: #{tpu_custom_call.1} parent=5 // pred_check_branch
        %203 = sbr.rel (%p200) target = $region36
      $region35: #{tpu_custom_call.1} parent=5 // pred_region
        %s204 = ssub.s32 %s13, 1
        %p205 = scmp.lt.s32.totalorder %s22, 1
        %s206 = scalar_select %p205, %s22, 1
        %s207 = smul.addr %s206, 4
        %s208 = smul.addr %s207, 8
        %s209 = scalar_lea.vmem %s0, %s208
        %p210 = pneg %p51
        %p211 = pneg %p48
        %p212 = scmp.lt.s32.totalorder %s23, 1
        %s213 = scalar_select %p212, %s23, 1
        %s214 = smul.addr %s213, 3
        %s215 = smul.addr %s214, 8
        %s216 = scalar_lea.vmem %s1, %s215
        %p217 = pneg %p77
        %p218 = pneg %p74
        %p219 = scmp.lt.s32.totalorder %s23, 1
        %s220 = scalar_select %p219, %s23, 1
        %s221 = smul.addr %s220, 3
        %s222 = smul.addr %s221, 8
        %s223 = scalar_lea.vmem %s2, %s222
        %p224 = pneg %p103
        %p225 = pneg %p100
        %p226 = pneg %p124
        %p227 = pneg %p121
        %p228 = pneg %p152
        %p229 = pneg %p149
        %s230 = sand.u32 %s139, 1
        %s231 = scalar_lea.sflag [#allocation8], %s230
        %s232 = sand.u32 %s139, 1
        %s233 = smul.addr %s232, 16
        %s234 = scalar_lea.vmem [#allocation7], %s233
        %p235 = scmp.lt.s32.totalorder %s22, 1
        %s236 = scalar_select %p235, %s22, 1
        %s237 = smul.addr %s236, 4
        %s238 = smul.addr %s237, 8
        %s239 = scalar_lea.vmem %s0, %s238
        %p240 = scmp.lt.s32.totalorder %s23, 1
        %s241 = scalar_select %p240, %s23, 1
        %s242 = smul.addr %s241, 3
        %s243 = smul.addr %s242, 8
        %s244 = scalar_lea.vmem %s1, %s243
        %p245 = scmp.lt.s32.totalorder %s23, 1
        %s246 = scalar_select %p245, %s23, 1
        %s247 = smul.addr %s246, 3
        %s248 = smul.addr %s247, 8
        %s249 = scalar_lea.vmem %s2, %s248
        %v250 = vld [vmem:[%s239] sm:$0xff]
        %v251 = vld [vmem:[%s239 + $0x8] sm:$0xff]
        %v252 = vld [vmem:[%s239 + $0x10] sm:$0xff]
        %v253 = vld [vmem:[%s239 + $0x18] sm:$0xff]
        %v254 = vld [vmem:[%s244] sm:$0xff]
        %v255 = vld [vmem:[%s244 + $0x8] sm:$0xff]
        %v256 = vld [vmem:[%s244 + $0x10] sm:$0xff]
        %v257 = vld [vmem:[%s249] sm:$0xff]
        %v258 = vld [vmem:[%s249 + $0x8] sm:$0xff]
        %v259 = vld [vmem:[%s249 + $0x10] sm:$0xff]
        %261 = vset.pattern.permute.xlu0 0
        %262 = vperm.xlu0 %261, %v257
        %v263 = vpop.permute.xlu0 %262
        %266 = vset.pattern.permute.xlu0 0
        %267 = vperm.xlu0 %266, %v258
        %v268 = vpop.permute.xlu0 %267
        %271 = vset.pattern.permute.xlu0 0
        %272 = vperm.xlu0 %271, %v259
        %v273 = vpop.permute.xlu0 %272
        %vm275 = vcmask 130048
        %v277 = vsel %vm275, %v254, 0
        %v280 = vsel %vm275, %v255, 0
        %v283 = vsel %vm275, %v256, 0
        %285 = vmatpush.msra.mxu0 0.0
        %286 = vmatpush.msra.mxu0 0.0
        %287 = vmatpush.msra.mxu0 0.0
        %288 = vmatpush.msra.mxu0 0.0
        %289 = vmatpush.msra.mxu0 0.0
        %290 = vmatpush.msra.mxu0 0.0
        %291 = vmatpush.msra.mxu0 0.0
        %292 = vmatpush.msra.mxu0 0.0
        %293 = vmatpush.msra.mxu0 0.0
        %294 = vmatpush.msra.mxu0 0.0
        %295 = vmatpush.msra.mxu0 0.0
        %296 = vmatpush.msra.mxu0 0.0
        %297 = vmatpush.msra.mxu0 0.0
        %298 = vmatpush.msra.mxu0 0.0
        %299 = vmatpush.msra.mxu0 %v252
        %300 = vmatpush.msra.mxu0 %v250
        %301 = vmatmul.f32.gmra.mxu0 %v277
        %v302 = vpop.f32.mrf.mxu0
        %v303 = vadd.f32 %v263, %v302
        %304 = vmatmul.f32.gmra.mxu0 %v280
        %v305 = vpop.f32.mrf.mxu0
        %v306 = vadd.f32 %v268, %v305
        %307 = vmatmul.f32.gmra.mxu0 %v283
        %v308 = vpop.f32.mrf.mxu0
        %v309 = vadd.f32 %v273, %v308
        %310 = vdwg.mxu0
        %311 = vmatpush.msra.mxu0 0.0
        %312 = vmatpush.msra.mxu0 0.0
        %313 = vmatpush.msra.mxu0 0.0
        %314 = vmatpush.msra.mxu0 0.0
        %315 = vmatpush.msra.mxu0 0.0
        %316 = vmatpush.msra.mxu0 0.0
        %317 = vmatpush.msra.mxu0 0.0
        %318 = vmatpush.msra.mxu0 0.0
        %319 = vmatpush.msra.mxu0 0.0
        %320 = vmatpush.msra.mxu0 0.0
        %321 = vmatpush.msra.mxu0 0.0
        %322 = vmatpush.msra.mxu0 0.0
        %323 = vmatpush.msra.mxu0 0.0
        %324 = vmatpush.msra.mxu0 0.0
        %325 = vmatpush.msra.mxu0 %v253
        %326 = vmatpush.msra.mxu0 %v251
        %327 = vmatmul.f32.gmra.mxu0 %v277
        %v328 = vpop.f32.mrf.mxu0
        %v329 = vadd.f32 %v263, %v328
        %330 = vmatmul.f32.gmra.mxu0 %v280
        %v331 = vpop.f32.mrf.mxu0
        %v332 = vadd.f32 %v268, %v331
        %333 = vmatmul.f32.gmra.mxu0 %v283
        %v334 = vpop.f32.mrf.mxu0
        %v335 = vadd.f32 %v273, %v334
        %336 = vdwg.mxu0
        %v337 = vmax.f32 %v303, 0.0
        %v338 = vmax.f32 %v329, 0.0
        %v339 = vmax.f32 %v306, 0.0
        %v340 = vmax.f32 %v332, 0.0
        %vm341 = vcmask 138240
        %342 = vst.msk [vmem:[#allocation2] sm:$0xff] %vm341, 0.0
        %vm343 = vcmask 277640
        %344 = vst.msk [vmem:[#allocation2 + $0x10] sm:$0xff] %vm343, 0.0
        %345 = vst.msk [vmem:[#allocation3] sm:$0xff] %vm341, 0.0
        %346 = vst.msk [vmem:[#allocation3 + $0x10] sm:$0xff] %vm343, 0.0
        %349 = vrot.lane.b32.xlu0 %v337, 17
        %v350 = vpop.permute.xlu0 %349
        %351 = vrot.lane.b32.xlu0 %v338, 17
        %v352 = vpop.permute.xlu0 %351
        %v353 = vsel %vm341, %v350, %v352
        %vm357 = vcmask 1047688
        %358 = vst.msk [vmem:[#allocation2] sm:$0xff] %vm357, %v350
        %359 = vst [vmem:[#allocation2 + $0x8] sm:$0xff] %v353
        %360 = vst.msk [vmem:[#allocation2 + $0x10] sm:$0xff] %vm341, %v352
        %363 = vrot.lane.b32.xlu0 %v339, 17
        %v364 = vpop.permute.xlu0 %363
        %365 = vrot.lane.b32.xlu0 %v340, 17
        %v366 = vpop.permute.xlu0 %365
        %v367 = vsel %vm341, %v364, %v366
        %371 = vst.msk [vmem:[#allocation3] sm:$0xff] %vm357, %v364
        %372 = vst [vmem:[#allocation3 + $0x8] sm:$0xff] %v367
        %373 = vst.msk [vmem:[#allocation3 + $0x10] sm:$0xff] %vm341, %v366
        %374 = vst [vmem:[#allocation4] sm:$0xff] %v309
        %375 = vst [vmem:[#allocation4 + $0x8] sm:$0xff] %v335
        %v376 = vlaneseq
        %vm377 = vcmp.ge.s32.totalorder %v376, 0
        %vm378 = vcmp.lt.s32.totalorder %v376, 256
        %vm379 = vmand %vm377, %vm378
        %s380 = scalar_lea.vmem [#allocation4], 16
        %381 = vst.msk [vmem:[%s380] ss:$8 sm:$0x3] %vm379, 1.0
        %382 = vst.msk [vmem:[%s380] ss:$8 sm:$0x0] %vm379, 1.0
        %v383 = vld [vmem:[#allocation4] sm:$0xff]
        %v384 = vld [vmem:[#allocation4 + $0x8] sm:$0xff]
        %v385 = vld [vmem:[#allocation4 + $0x10] sm:$0x1]
        %v386 = vld [vmem:[#allocation4 + $0x18] sm:$0x1]
        %v387 = vld [vmem:[#allocation2] sm:$0xff]
        %v388 = vld [vmem:[#allocation2 + $0x8] sm:$0xff]
        %v389 = vld [vmem:[#allocation3] sm:$0xff]
        %v390 = vld [vmem:[#allocation3 + $0x8] sm:$0xff]
        %v391 = vld [vmem:[%s3] ss:$4 sm:$0x3]
        %v393 = vperm.slane %v391, 0
        %v394 = vperm.slane %v391, 1
        %v397 = vmul.f32 %v387, %v393
        %v398 = vmul.f32 %v388, %v394
        %v399 = vmul.f32 %v389, %v393
        %v400 = vmul.f32 %v390, %v394
        %401 = vst [vmem:[#allocation5] sm:$0xff] %v397
        %402 = vst [vmem:[#allocation5 + $0x8] sm:$0xff] %v398
        %403 = vmatpush.xpose.msra.mxu0 0.0
        %404 = vmatpush.xpose.msra.mxu0 0.0
        %405 = vmatpush.xpose.msra.mxu0 0.0
        %406 = vmatpush.xpose.msra.mxu0 0.0
        %407 = vmatpush.xpose.msra.mxu0 0.0
        %408 = vmatpush.xpose.msra.mxu0 0.0
        %409 = vmatpush.xpose.msra.mxu0 0.0
        %410 = vmatpush.xpose.msra.mxu0 0.0
        %411 = vmatpush.xpose.msra.mxu0 0.0
        %412 = vmatpush.xpose.msra.mxu0 0.0
        %413 = vmatpush.xpose.msra.mxu0 0.0
        %414 = vmatpush.xpose.msra.mxu0 0.0
        %415 = vmatpush.xpose.msra.mxu0 0.0
        %416 = vmatpush.xpose.msra.mxu0 0.0
        %417 = vmatpush.xpose.msra.mxu0 %v385
        %418 = vmatpush.xpose.msra.mxu0 %v383
        %419 = vmatmul.f32.gmra.mxu0 %v399
        %v420 = vpop.f32.mrf.mxu0
        %v421 = vadd.f32 0.0, %v420
        %422 = vdwg.mxu0
        %423 = vmatpush.xpose.msra.mxu0 0.0
        %424 = vmatpush.xpose.msra.mxu0 0.0
        %425 = vmatpush.xpose.msra.mxu0 0.0
        %426 = vmatpush.xpose.msra.mxu0 0.0
        %427 = vmatpush.xpose.msra.mxu0 0.0
        %428 = vmatpush.xpose.msra.mxu0 0.0
        %429 = vmatpush.xpose.msra.mxu0 0.0
        %430 = vmatpush.xpose.msra.mxu0 0.0
        %431 = vmatpush.xpose.msra.mxu0 0.0
        %432 = vmatpush.xpose.msra.mxu0 0.0
        %433 = vmatpush.xpose.msra.mxu0 0.0
        %434 = vmatpush.xpose.msra.mxu0 0.0
        %435 = vmatpush.xpose.msra.mxu0 0.0
        %436 = vmatpush.xpose.msra.mxu0 0.0
        %437 = vmatpush.xpose.msra.mxu0 %v386
        %438 = vmatpush.xpose.msra.mxu0 %v384
        %439 = vmatmul.f32.gmra.mxu0 %v400
        %v440 = vpop.f32.mrf.mxu0
        %v441 = vadd.f32 %v421, %v440
        %442 = vdwg.mxu0
        %vm443 = vcmask 72704
        %444 = vst.msk [vmem:[#allocation6] sm:$0xff] %vm443, %v441
        %v445 = vld [vmem:[#allocation2] sm:$0xff]
        %v446 = vld [vmem:[#allocation2 + $0x8] sm:$0xff]
        %v447 = vld [vmem:[#allocation2 + $0x10] sm:$0xff]
        %v448 = vld [vmem:[#allocation3] sm:$0xff]
        %v449 = vld [vmem:[#allocation3 + $0x8] sm:$0xff]
        %v450 = vld [vmem:[#allocation3 + $0x10] sm:$0xff]
        %454 = vrot.lane.b32.xlu0 %v445, 127
        %v455 = vpop.permute.xlu0 %454
        %456 = vrot.lane.b32.xlu0 %v446, 127
        %v457 = vpop.permute.xlu0 %456
        %458 = vrot.lane.b32.xlu0 %v447, 127
        %v459 = vpop.permute.xlu0 %458
        %vm460 = vcmask 1039360
        %v461 = vsel %vm460, %v455, %v457
        %v462 = vsel %vm460, %v457, %v459
        %465 = vst [vmem:[#allocation5 + $0x10] sm:$0xff] %v461
        %466 = vst [vmem:[#allocation5 + $0x18] sm:$0xff] %v462
        %470 = vrot.lane.b32.xlu0 %v448, 127
        %v471 = vpop.permute.xlu0 %470
        %472 = vrot.lane.b32.xlu0 %v449, 127
        %v473 = vpop.permute.xlu0 %472
        %474 = vrot.lane.b32.xlu0 %v450, 127
        %v475 = vpop.permute.xlu0 %474
        %v476 = vsel %vm460, %v471, %v473
        %v477 = vsel %vm460, %v473, %v475
        %480 = vmatpush.xpose.msra.mxu0 0.0
        %481 = vmatpush.xpose.msra.mxu0 0.0
        %482 = vmatpush.xpose.msra.mxu0 0.0
        %483 = vmatpush.xpose.msra.mxu0 0.0
        %484 = vmatpush.xpose.msra.mxu0 0.0
        %485 = vmatpush.xpose.msra.mxu0 0.0
        %486 = vmatpush.xpose.msra.mxu0 0.0
        %487 = vmatpush.xpose.msra.mxu0 0.0
        %488 = vmatpush.xpose.msra.mxu0 0.0
        %489 = vmatpush.xpose.msra.mxu0 0.0
        %490 = vmatpush.xpose.msra.mxu0 0.0
        %491 = vmatpush.xpose.msra.mxu0 0.0
        %492 = vmatpush.xpose.msra.mxu0 0.0
        %493 = vmatpush.xpose.msra.mxu0 0.0
        %494 = vmatpush.xpose.msra.mxu0 %v385
        %495 = vmatpush.xpose.msra.mxu0 %v383
        %496 = vmatmul.f32.gmra.mxu0 %v476
        %v497 = vpop.f32.mrf.mxu0
        %v498 = vadd.f32 0.0, %v497
        %499 = vdwg.mxu0
        %500 = vmatpush.xpose.msra.mxu0 0.0
        %501 = vmatpush.xpose.msra.mxu0 0.0
        %502 = vmatpush.xpose.msra.mxu0 0.0
        %503 = vmatpush.xpose.msra.mxu0 0.0
        %504 = vmatpush.xpose.msra.mxu0 0.0
        %505 = vmatpush.xpose.msra.mxu0 0.0
        %506 = vmatpush.xpose.msra.mxu0 0.0
        %507 = vmatpush.xpose.msra.mxu0 0.0
        %508 = vmatpush.xpose.msra.mxu0 0.0
        %509 = vmatpush.xpose.msra.mxu0 0.0
        %510 = vmatpush.xpose.msra.mxu0 0.0
        %511 = vmatpush.xpose.msra.mxu0 0.0
        %512 = vmatpush.xpose.msra.mxu0 0.0
        %513 = vmatpush.xpose.msra.mxu0 0.0
        %514 = vmatpush.xpose.msra.mxu0 %v386
        %515 = vmatpush.xpose.msra.mxu0 %v384
        %516 = vmatmul.f32.gmra.mxu0 %v477
        %v517 = vpop.f32.mrf.mxu0
        %v518 = vadd.f32 %v498, %v517
        %519 = vdwg.mxu0
        %520 = vst.msk [vmem:[#allocation6 + $0x8] sm:$0xff] %vm443, %v518
        %v521 = vld [vmem:[#allocation2] sm:$0xff]
        %v522 = vld [vmem:[#allocation2 + $0x8] sm:$0xff]
        %v523 = vld [vmem:[#allocation2 + $0x10] sm:$0xff]
        %v524 = vld [vmem:[#allocation3] sm:$0xff]
        %v525 = vld [vmem:[#allocation3 + $0x8] sm:$0xff]
        %v526 = vld [vmem:[#allocation3 + $0x10] sm:$0xff]
        %s527 = scalar_lea.vmem %s3, 2
        %v528 = vld [vmem:[%s527] ss:$4 sm:$0x3]
        %v530 = vperm.slane %v528, 0
        %v531 = vperm.slane %v528, 1
        %532 = vrot.lane.b32.xlu0 %v530, 2
        %v533 = vpop.permute.xlu0 %532
        %534 = vrot.lane.b32.xlu0 %v531, 2
        %v535 = vpop.permute.xlu0 %534
        %vm536 = vcmask 15360
        %v537 = vsel %vm536, %v533, %v535
        %v541 = vmul.f32 %v521, %v533
        %v542 = vmul.f32 %v522, %v537
        %v543 = vmul.f32 %v523, %v535
        %v544 = vmul.f32 %v524, %v533
        %v545 = vmul.f32 %v525, %v537
        %v546 = vmul.f32 %v526, %v535
        %550 = vrot.lane.b32.xlu0 %v541, 126
        %v551 = vpop.permute.xlu0 %550
        %552 = vrot.lane.b32.xlu0 %v542, 126
        %v553 = vpop.permute.xlu0 %552
        %554 = vrot.lane.b32.xlu0 %v543, 126
        %v555 = vpop.permute.xlu0 %554
        %vm556 = vcmask 1031168
        %v557 = vsel %vm556, %v551, %v553
        %v558 = vsel %vm556, %v553, %v555
        %561 = vst [vmem:[#allocation5 + $0x20] sm:$0xff] %v557
        %562 = vst [vmem:[#allocation5 + $0x28] sm:$0xff] %v558
        %566 = vrot.lane.b32.xlu0 %v544, 126
        %v567 = vpop.permute.xlu0 %566
        %568 = vrot.lane.b32.xlu0 %v545, 126
        %v569 = vpop.permute.xlu0 %568
        %570 = vrot.lane.b32.xlu0 %v546, 126
        %v571 = vpop.permute.xlu0 %570
        %v572 = vsel %vm556, %v567, %v569
        %v573 = vsel %vm556, %v569, %v571
        %576 = vmatpush.xpose.msra.mxu0 0.0
        %577 = vmatpush.xpose.msra.mxu0 0.0
        %578 = vmatpush.xpose.msra.mxu0 0.0
        %579 = vmatpush.xpose.msra.mxu0 0.0
        %580 = vmatpush.xpose.msra.mxu0 0.0
        %581 = vmatpush.xpose.msra.mxu0 0.0
        %582 = vmatpush.xpose.msra.mxu0 0.0
        %583 = vmatpush.xpose.msra.mxu0 0.0
        %584 = vmatpush.xpose.msra.mxu0 0.0
        %585 = vmatpush.xpose.msra.mxu0 0.0
        %586 = vmatpush.xpose.msra.mxu0 0.0
        %587 = vmatpush.xpose.msra.mxu0 0.0
        %588 = vmatpush.xpose.msra.mxu0 0.0
        %589 = vmatpush.xpose.msra.mxu0 0.0
        %590 = vmatpush.xpose.msra.mxu0 %v385
        %591 = vmatpush.xpose.msra.mxu0 %v383
        %592 = vmatmul.f32.gmra.mxu0 %v572
        %v593 = vpop.f32.mrf.mxu0
        %v594 = vadd.f32 0.0, %v593
        %595 = vdwg.mxu0
        %596 = vmatpush.xpose.msra.mxu0 0.0
        %597 = vmatpush.xpose.msra.mxu0 0.0
        %598 = vmatpush.xpose.msra.mxu0 0.0
        %599 = vmatpush.xpose.msra.mxu0 0.0
        %600 = vmatpush.xpose.msra.mxu0 0.0
        %601 = vmatpush.xpose.msra.mxu0 0.0
        %602 = vmatpush.xpose.msra.mxu0 0.0
        %603 = vmatpush.xpose.msra.mxu0 0.0
        %604 = vmatpush.xpose.msra.mxu0 0.0
        %605 = vmatpush.xpose.msra.mxu0 0.0
        %606 = vmatpush.xpose.msra.mxu0 0.0
        %607 = vmatpush.xpose.msra.mxu0 0.0
        %608 = vmatpush.xpose.msra.mxu0 0.0
        %609 = vmatpush.xpose.msra.mxu0 0.0
        %610 = vmatpush.xpose.msra.mxu0 %v386
        %611 = vmatpush.xpose.msra.mxu0 %v384
        %612 = vmatmul.f32.gmra.mxu0 %v573
        %v613 = vpop.f32.mrf.mxu0
        %v614 = vadd.f32 %v594, %v613
        %615 = vdwg.mxu0
        %616 = vst.msk [vmem:[#allocation6 + $0x10] sm:$0xff] %vm443, %v614
        %v617 = vld [vmem:[#allocation2] sm:$0xff]
        %v618 = vld [vmem:[#allocation2 + $0x8] sm:$0xff]
        %v619 = vld [vmem:[#allocation2 + $0x10] sm:$0xff]
        %v620 = vld [vmem:[#allocation3] sm:$0xff]
        %v621 = vld [vmem:[#allocation3 + $0x8] sm:$0xff]
        %v622 = vld [vmem:[#allocation3 + $0x10] sm:$0xff]
        %v623 = vld [vmem:[%s3] ss:$4 sm:$0x3]
        %v625 = vperm.slane %v623, 0
        %v626 = vperm.slane %v623, 1
        %627 = vrot.lane.b32.xlu0 %v625, 16
        %v628 = vpop.permute.xlu0 %627
        %629 = vrot.lane.b32.xlu0 %v626, 16
        %v630 = vpop.permute.xlu0 %629
        %v631 = vsel %vm275, %v628, %v630
        %v635 = vmul.f32 %v617, %v628
        %v636 = vmul.f32 %v618, %v631
        %v637 = vmul.f32 %v619, %v630
        %v638 = vmul.f32 %v620, %v628
        %v639 = vmul.f32 %v621, %v631
        %v640 = vmul.f32 %v622, %v630
        %644 = vrot.lane.b32.xlu0 %v635, 112
        %v645 = vpop.permute.xlu0 %644
        %646 = vrot.lane.b32.xlu0 %v636, 112
        %v647 = vpop.permute.xlu0 %646
        %648 = vrot.lane.b32.xlu0 %v637, 112
        %v649 = vpop.permute.xlu0 %648
        %vm650 = vcmask 916480
        %v651 = vsel %vm650, %v645, %v647
        %v652 = vsel %vm650, %v647, %v649
        %655 = vst [vmem:[#allocation5 + $0x30] sm:$0xff] %v651
        %656 = vst [vmem:[#allocation5 + $0x38] sm:$0xff] %v652
        %660 = vrot.lane.b32.xlu0 %v638, 112
        %v661 = vpop.permute.xlu0 %660
        %662 = vrot.lane.b32.xlu0 %v639, 112
        %v663 = vpop.permute.xlu0 %662
        %664 = vrot.lane.b32.xlu0 %v640, 112
        %v665 = vpop.permute.xlu0 %664
        %v666 = vsel %vm650, %v661, %v663
        %v667 = vsel %vm650, %v663, %v665
        %670 = vmatpush.xpose.msra.mxu0 0.0
        %671 = vmatpush.xpose.msra.mxu0 0.0
        %672 = vmatpush.xpose.msra.mxu0 0.0
        %673 = vmatpush.xpose.msra.mxu0 0.0
        %674 = vmatpush.xpose.msra.mxu0 0.0
        %675 = vmatpush.xpose.msra.mxu0 0.0
        %676 = vmatpush.xpose.msra.mxu0 0.0
        %677 = vmatpush.xpose.msra.mxu0 0.0
        %678 = vmatpush.xpose.msra.mxu0 0.0
        %679 = vmatpush.xpose.msra.mxu0 0.0
        %680 = vmatpush.xpose.msra.mxu0 0.0
        %681 = vmatpush.xpose.msra.mxu0 0.0
        %682 = vmatpush.xpose.msra.mxu0 0.0
        %683 = vmatpush.xpose.msra.mxu0 0.0
        %684 = vmatpush.xpose.msra.mxu0 %v385
        %685 = vmatpush.xpose.msra.mxu0 %v383
        %686 = vmatmul.f32.gmra.mxu0 %v666
        %v687 = vpop.f32.mrf.mxu0
        %v688 = vadd.f32 0.0, %v687
        %689 = vdwg.mxu0
        %690 = vmatpush.xpose.msra.mxu0 0.0
        %691 = vmatpush.xpose.msra.mxu0 0.0
        %692 = vmatpush.xpose.msra.mxu0 0.0
        %693 = vmatpush.xpose.msra.mxu0 0.0
        %694 = vmatpush.xpose.msra.mxu0 0.0
        %695 = vmatpush.xpose.msra.mxu0 0.0
        %696 = vmatpush.xpose.msra.mxu0 0.0
        %697 = vmatpush.xpose.msra.mxu0 0.0
        %698 = vmatpush.xpose.msra.mxu0 0.0
        %699 = vmatpush.xpose.msra.mxu0 0.0
        %700 = vmatpush.xpose.msra.mxu0 0.0
        %701 = vmatpush.xpose.msra.mxu0 0.0
        %702 = vmatpush.xpose.msra.mxu0 0.0
        %703 = vmatpush.xpose.msra.mxu0 0.0
        %704 = vmatpush.xpose.msra.mxu0 %v386
        %705 = vmatpush.xpose.msra.mxu0 %v384
        %706 = vmatmul.f32.gmra.mxu0 %v667
        %v707 = vpop.f32.mrf.mxu0
        %v708 = vadd.f32 %v688, %v707
        %709 = vdwg.mxu0
        %710 = vst.msk [vmem:[#allocation6 + $0x18] sm:$0xff] %vm443, %v708
        %v711 = vld [vmem:[#allocation2] sm:$0xff]
        %v712 = vld [vmem:[#allocation2 + $0x8] sm:$0xff]
        %v713 = vld [vmem:[#allocation2 + $0x10] sm:$0xff]
        %v714 = vld [vmem:[#allocation3] sm:$0xff]
        %v715 = vld [vmem:[#allocation3 + $0x8] sm:$0xff]
        %v716 = vld [vmem:[#allocation3 + $0x10] sm:$0xff]
        %720 = vrot.lane.b32.xlu0 %v711, 111
        %v721 = vpop.permute.xlu0 %720
        %722 = vrot.lane.b32.xlu0 %v712, 111
        %v723 = vpop.permute.xlu0 %722
        %724 = vrot.lane.b32.xlu0 %v713, 111
        %v725 = vpop.permute.xlu0 %724
        %vm726 = vcmask 908288
        %v727 = vsel %vm726, %v721, %v723
        %v728 = vsel %vm726, %v723, %v725
        %731 = vst [vmem:[#allocation5 + $0x40] sm:$0xff] %v727
        %732 = vst [vmem:[#allocation5 + $0x48] sm:$0xff] %v728
        %736 = vrot.lane.b32.xlu0 %v714, 111
        %v737 = vpop.permute.xlu0 %736
        %738 = vrot.lane.b32.xlu0 %v715, 111
        %v739 = vpop.permute.xlu0 %738
        %740 = vrot.lane.b32.xlu0 %v716, 111
        %v741 = vpop.permute.xlu0 %740
        %v742 = vsel %vm726, %v737, %v739
        %v743 = vsel %vm726, %v739, %v741
        %746 = vmatpush.xpose.msra.mxu0 0.0
        %747 = vmatpush.xpose.msra.mxu0 0.0
        %748 = vmatpush.xpose.msra.mxu0 0.0
        %749 = vmatpush.xpose.msra.mxu0 0.0
        %750 = vmatpush.xpose.msra.mxu0 0.0
        %751 = vmatpush.xpose.msra.mxu0 0.0
        %752 = vmatpush.xpose.msra.mxu0 0.0
        %753 = vmatpush.xpose.msra.mxu0 0.0
        %754 = vmatpush.xpose.msra.mxu0 0.0
        %755 = vmatpush.xpose.msra.mxu0 0.0
        %756 = vmatpush.xpose.msra.mxu0 0.0
        %757 = vmatpush.xpose.msra.mxu0 0.0
        %758 = vmatpush.xpose.msra.mxu0 0.0
        %759 = vmatpush.xpose.msra.mxu0 0.0
        %760 = vmatpush.xpose.msra.mxu0 %v385
        %761 = vmatpush.xpose.msra.mxu0 %v383
        %762 = vmatmul.f32.gmra.mxu0 %v742
        %v763 = vpop.f32.mrf.mxu0
        %v764 = vadd.f32 0.0, %v763
        %765 = vdwg.mxu0
        %766 = vmatpush.xpose.msra.mxu0 0.0
        %767 = vmatpush.xpose.msra.mxu0 0.0
        %768 = vmatpush.xpose.msra.mxu0 0.0
        %769 = vmatpush.xpose.msra.mxu0 0.0
        %770 = vmatpush.xpose.msra.mxu0 0.0
        %771 = vmatpush.xpose.msra.mxu0 0.0
        %772 = vmatpush.xpose.msra.mxu0 0.0
        %773 = vmatpush.xpose.msra.mxu0 0.0
        %774 = vmatpush.xpose.msra.mxu0 0.0
        %775 = vmatpush.xpose.msra.mxu0 0.0
        %776 = vmatpush.xpose.msra.mxu0 0.0
        %777 = vmatpush.xpose.msra.mxu0 0.0
        %778 = vmatpush.xpose.msra.mxu0 0.0
        %779 = vmatpush.xpose.msra.mxu0 0.0
        %780 = vmatpush.xpose.msra.mxu0 %v386
        %781 = vmatpush.xpose.msra.mxu0 %v384
        %782 = vmatmul.f32.gmra.mxu0 %v743
        %v783 = vpop.f32.mrf.mxu0
        %v784 = vadd.f32 %v764, %v783
        %785 = vdwg.mxu0
        %786 = vst.msk [vmem:[#allocation6 + $0x20] sm:$0xff] %vm443, %v784
        %v787 = vld [vmem:[#allocation2] sm:$0xff]
        %v788 = vld [vmem:[#allocation2 + $0x8] sm:$0xff]
        %v789 = vld [vmem:[#allocation2 + $0x10] sm:$0xff]
        %v790 = vld [vmem:[#allocation3] sm:$0xff]
        %v791 = vld [vmem:[#allocation3 + $0x8] sm:$0xff]
        %v792 = vld [vmem:[#allocation3 + $0x10] sm:$0xff]
        %v793 = vld [vmem:[%s527] ss:$4 sm:$0x3]
        %v795 = vperm.slane %v793, 0
        %v796 = vperm.slane %v793, 1
        %797 = vrot.lane.b32.xlu0 %v795, 18
        %v798 = vpop.permute.xlu0 %797
        %799 = vrot.lane.b32.xlu0 %v796, 18
        %v800 = vpop.permute.xlu0 %799
        %vm801 = vcmask 146432
        %v802 = vsel %vm801, %v798, %v800
        %v806 = vmul.f32 %v787, %v798
        %v807 = vmul.f32 %v788, %v802
        %v808 = vmul.f32 %v789, %v800
        %v809 = vmul.f32 %v790, %v798
        %v810 = vmul.f32 %v791, %v802
        %v811 = vmul.f32 %v792, %v800
        %815 = vrot.lane.b32.xlu0 %v806, 110
        %v816 = vpop.permute.xlu0 %815
        %817 = vrot.lane.b32.xlu0 %v807, 110
        %v818 = vpop.permute.xlu0 %817
        %819 = vrot.lane.b32.xlu0 %v808, 110
        %v820 = vpop.permute.xlu0 %819
        %vm821 = vcmask 900096
        %v822 = vsel %vm821, %v816, %v818
        %v823 = vsel %vm821, %v818, %v820
        %826 = vst [vmem:[#allocation5 + $0x50] sm:$0xff] %v822
        %827 = vst [vmem:[#allocation5 + $0x58] sm:$0xff] %v823
        %831 = vrot.lane.b32.xlu0 %v809, 110
        %v832 = vpop.permute.xlu0 %831
        %833 = vrot.lane.b32.xlu0 %v810, 110
        %v834 = vpop.permute.xlu0 %833
        %835 = vrot.lane.b32.xlu0 %v811, 110
        %v836 = vpop.permute.xlu0 %835
        %v837 = vsel %vm821, %v832, %v834
        %v838 = vsel %vm821, %v834, %v836
        %841 = vmatpush.xpose.msra.mxu0 0.0
        %842 = vmatpush.xpose.msra.mxu0 0.0
        %843 = vmatpush.xpose.msra.mxu0 0.0
        %844 = vmatpush.xpose.msra.mxu0 0.0
        %845 = vmatpush.xpose.msra.mxu0 0.0
        %846 = vmatpush.xpose.msra.mxu0 0.0
        %847 = vmatpush.xpose.msra.mxu0 0.0
        %848 = vmatpush.xpose.msra.mxu0 0.0
        %849 = vmatpush.xpose.msra.mxu0 0.0
        %850 = vmatpush.xpose.msra.mxu0 0.0
        %851 = vmatpush.xpose.msra.mxu0 0.0
        %852 = vmatpush.xpose.msra.mxu0 0.0
        %853 = vmatpush.xpose.msra.mxu0 0.0
        %854 = vmatpush.xpose.msra.mxu0 0.0
        %855 = vmatpush.xpose.msra.mxu0 %v385
        %856 = vmatpush.xpose.msra.mxu0 %v383
        %857 = vmatmul.f32.gmra.mxu0 %v837
        %v858 = vpop.f32.mrf.mxu0
        %v859 = vadd.f32 0.0, %v858
        %860 = vdwg.mxu0
        %861 = vmatpush.xpose.msra.mxu0 0.0
        %862 = vmatpush.xpose.msra.mxu0 0.0
        %863 = vmatpush.xpose.msra.mxu0 0.0
        %864 = vmatpush.xpose.msra.mxu0 0.0
        %865 = vmatpush.xpose.msra.mxu0 0.0
        %866 = vmatpush.xpose.msra.mxu0 0.0
        %867 = vmatpush.xpose.msra.mxu0 0.0
        %868 = vmatpush.xpose.msra.mxu0 0.0
        %869 = vmatpush.xpose.msra.mxu0 0.0
        %870 = vmatpush.xpose.msra.mxu0 0.0
        %871 = vmatpush.xpose.msra.mxu0 0.0
        %872 = vmatpush.xpose.msra.mxu0 0.0
        %873 = vmatpush.xpose.msra.mxu0 0.0
        %874 = vmatpush.xpose.msra.mxu0 0.0
        %875 = vmatpush.xpose.msra.mxu0 %v386
        %876 = vmatpush.xpose.msra.mxu0 %v384
        %877 = vmatmul.f32.gmra.mxu0 %v838
        %v878 = vpop.f32.mrf.mxu0
        %v879 = vadd.f32 %v859, %v878
        %880 = vdwg.mxu0
        %881 = vst.msk [vmem:[#allocation6 + $0x28] sm:$0xff] %vm443, %v879
        %v882 = vld [vmem:[#allocation2] sm:$0xff]
        %v883 = vld [vmem:[#allocation2 + $0x8] sm:$0xff]
        %v884 = vld [vmem:[#allocation2 + $0x10] sm:$0xff]
        %v885 = vld [vmem:[#allocation3] sm:$0xff]
        %v886 = vld [vmem:[#allocation3 + $0x8] sm:$0xff]
        %v887 = vld [vmem:[#allocation3 + $0x10] sm:$0xff]
        %v888 = vld [vmem:[%s3] ss:$4 sm:$0x3]
        %v890 = vperm.slane %v888, 0
        %v891 = vperm.slane %v888, 1
        %892 = vrot.lane.b32.xlu0 %v890, 32
        %v893 = vpop.permute.xlu0 %892
        %894 = vrot.lane.b32.xlu0 %v891, 32
        %v895 = vpop.permute.xlu0 %894
        %vm896 = vcmask 261120
        %v897 = vsel %vm896, %v893, %v895
        %v901 = vmul.f32 %v882, %v893
        %v902 = vmul.f32 %v883, %v897
        %v903 = vmul.f32 %v884, %v895
        %v904 = vmul.f32 %v885, %v893
        %v905 = vmul.f32 %v886, %v897
        %v906 = vmul.f32 %v887, %v895
        %910 = vrot.lane.b32.xlu0 %v901, 96
        %v911 = vpop.permute.xlu0 %910
        %912 = vrot.lane.b32.xlu0 %v902, 96
        %v913 = vpop.permute.xlu0 %912
        %914 = vrot.lane.b32.xlu0 %v903, 96
        %v915 = vpop.permute.xlu0 %914
        %vm916 = vcmask 785408
        %v917 = vsel %vm916, %v911, %v913
        %v918 = vsel %vm916, %v913, %v915
        %921 = vst [vmem:[#allocation5 + $0x60] sm:$0xff] %v917
        %922 = vst [vmem:[#allocation5 + $0x68] sm:$0xff] %v918
        %926 = vrot.lane.b32.xlu0 %v904, 96
        %v927 = vpop.permute.xlu0 %926
        %928 = vrot.lane.b32.xlu0 %v905, 96
        %v929 = vpop.permute.xlu0 %928
        %930 = vrot.lane.b32.xlu0 %v906, 96
        %v931 = vpop.permute.xlu0 %930
        %v932 = vsel %vm916, %v927, %v929
        %v933 = vsel %vm916, %v929, %v931
        %936 = vmatpush.xpose.msra.mxu0 0.0
        %937 = vmatpush.xpose.msra.mxu0 0.0
        %938 = vmatpush.xpose.msra.mxu0 0.0
        %939 = vmatpush.xpose.msra.mxu0 0.0
        %940 = vmatpush.xpose.msra.mxu0 0.0
        %941 = vmatpush.xpose.msra.mxu0 0.0
        %942 = vmatpush.xpose.msra.mxu0 0.0
        %943 = vmatpush.xpose.msra.mxu0 0.0
        %944 = vmatpush.xpose.msra.mxu0 0.0
        %945 = vmatpush.xpose.msra.mxu0 0.0
        %946 = vmatpush.xpose.msra.mxu0 0.0
        %947 = vmatpush.xpose.msra.mxu0 0.0
        %948 = vmatpush.xpose.msra.mxu0 0.0
        %949 = vmatpush.xpose.msra.mxu0 0.0
        %950 = vmatpush.xpose.msra.mxu0 %v385
        %951 = vmatpush.xpose.msra.mxu0 %v383
        %952 = vmatmul.f32.gmra.mxu0 %v932
        %v953 = vpop.f32.mrf.mxu0
        %v954 = vadd.f32 0.0, %v953
        %955 = vdwg.mxu0
        %956 = vmatpush.xpose.msra.mxu0 0.0
        %957 = vmatpush.xpose.msra.mxu0 0.0
        %958 = vmatpush.xpose.msra.mxu0 0.0
        %959 = vmatpush.xpose.msra.mxu0 0.0
        %960 = vmatpush.xpose.msra.mxu0 0.0
        %961 = vmatpush.xpose.msra.mxu0 0.0
        %962 = vmatpush.xpose.msra.mxu0 0.0
        %963 = vmatpush.xpose.msra.mxu0 0.0
        %964 = vmatpush.xpose.msra.mxu0 0.0
        %965 = vmatpush.xpose.msra.mxu0 0.0
        %966 = vmatpush.xpose.msra.mxu0 0.0
        %967 = vmatpush.xpose.msra.mxu0 0.0
        %968 = vmatpush.xpose.msra.mxu0 0.0
        %969 = vmatpush.xpose.msra.mxu0 0.0
        %970 = vmatpush.xpose.msra.mxu0 %v386
        %971 = vmatpush.xpose.msra.mxu0 %v384
        %972 = vmatmul.f32.gmra.mxu0 %v933
        %v973 = vpop.f32.mrf.mxu0
        %v974 = vadd.f32 %v954, %v973
        %975 = vdwg.mxu0
        %976 = vst.msk [vmem:[#allocation6 + $0x30] sm:$0xff] %vm443, %v974
        %v977 = vld [vmem:[#allocation2] sm:$0xff]
        %v978 = vld [vmem:[#allocation2 + $0x8] sm:$0xff]
        %v979 = vld [vmem:[#allocation2 + $0x10] sm:$0xff]
        %v980 = vld [vmem:[#allocation3] sm:$0xff]
        %v981 = vld [vmem:[#allocation3 + $0x8] sm:$0xff]
        %v982 = vld [vmem:[#allocation3 + $0x10] sm:$0xff]
        %986 = vrot.lane.b32.xlu0 %v977, 95
        %v987 = vpop.permute.xlu0 %986
        %988 = vrot.lane.b32.xlu0 %v978, 95
        %v989 = vpop.permute.xlu0 %988
        %990 = vrot.lane.b32.xlu0 %v979, 95
        %v991 = vpop.permute.xlu0 %990
        %vm992 = vcmask 777216
        %v993 = vsel %vm992, %v987, %v989
        %v994 = vsel %vm992, %v989, %v991
        %997 = vst [vmem:[#allocation5 + $0x70] sm:$0xff] %v993
        %998 = vst [vmem:[#allocation5 + $0x78] sm:$0xff] %v994
        %1002 = vrot.lane.b32.xlu0 %v980, 95
        %v1003 = vpop.permute.xlu0 %1002
        %1004 = vrot.lane.b32.xlu0 %v981, 95
        %v1005 = vpop.permute.xlu0 %1004
        %1006 = vrot.lane.b32.xlu0 %v982, 95
        %v1007 = vpop.permute.xlu0 %1006
        %v1008 = vsel %vm992, %v1003, %v1005
        %v1009 = vsel %vm992, %v1005, %v1007
        %1012 = vmatpush.xpose.msra.mxu0 0.0
        %1013 = vmatpush.xpose.msra.mxu0 0.0
        %1014 = vmatpush.xpose.msra.mxu0 0.0
        %1015 = vmatpush.xpose.msra.mxu0 0.0
        %1016 = vmatpush.xpose.msra.mxu0 0.0
        %1017 = vmatpush.xpose.msra.mxu0 0.0
        %1018 = vmatpush.xpose.msra.mxu0 0.0
        %1019 = vmatpush.xpose.msra.mxu0 0.0
        %1020 = vmatpush.xpose.msra.mxu0 0.0
        %1021 = vmatpush.xpose.msra.mxu0 0.0
        %1022 = vmatpush.xpose.msra.mxu0 0.0
        %1023 = vmatpush.xpose.msra.mxu0 0.0
        %1024 = vmatpush.xpose.msra.mxu0 0.0
        %1025 = vmatpush.xpose.msra.mxu0 0.0
        %1026 = vmatpush.xpose.msra.mxu0 %v385
        %1027 = vmatpush.xpose.msra.mxu0 %v383
        %1028 = vmatmul.f32.gmra.mxu0 %v1008
        %v1029 = vpop.f32.mrf.mxu0
        %v1030 = vadd.f32 0.0, %v1029
        %1031 = vdwg.mxu0
        %1032 = vmatpush.xpose.msra.mxu0 0.0
        %1033 = vmatpush.xpose.msra.mxu0 0.0
        %1034 = vmatpush.xpose.msra.mxu0 0.0
        %1035 = vmatpush.xpose.msra.mxu0 0.0
        %1036 = vmatpush.xpose.msra.mxu0 0.0
        %1037 = vmatpush.xpose.msra.mxu0 0.0
        %1038 = vmatpush.xpose.msra.mxu0 0.0
        %1039 = vmatpush.xpose.msra.mxu0 0.0
        %1040 = vmatpush.xpose.msra.mxu0 0.0
        %1041 = vmatpush.xpose.msra.mxu0 0.0
        %1042 = vmatpush.xpose.msra.mxu0 0.0
        %1043 = vmatpush.xpose.msra.mxu0 0.0
        %1044 = vmatpush.xpose.msra.mxu0 0.0
        %1045 = vmatpush.xpose.msra.mxu0 0.0
        %1046 = vmatpush.xpose.msra.mxu0 %v386
        %1047 = vmatpush.xpose.msra.mxu0 %v384
        %1048 = vmatmul.f32.gmra.mxu0 %v1009
        %v1049 = vpop.f32.mrf.mxu0
        %v1050 = vadd.f32 %v1030, %v1049
        %1051 = vdwg.mxu0
        %1052 = vst.msk [vmem:[#allocation6 + $0x38] sm:$0xff] %vm443, %v1050
        %v1053 = vld [vmem:[#allocation2] sm:$0xff]
        %v1054 = vld [vmem:[#allocation2 + $0x8] sm:$0xff]
        %v1055 = vld [vmem:[#allocation2 + $0x10] sm:$0xff]
        %v1056 = vld [vmem:[#allocation3] sm:$0xff]
        %v1057 = vld [vmem:[#allocation3 + $0x8] sm:$0xff]
        %v1058 = vld [vmem:[#allocation3 + $0x10] sm:$0xff]
        %v1059 = vld [vmem:[%s527] ss:$4 sm:$0x3]
        %v1061 = vperm.slane %v1059, 0
        %v1062 = vperm.slane %v1059, 1
        %1063 = vrot.lane.b32.xlu0 %v1061, 34
        %v1064 = vpop.permute.xlu0 %1063
        %1065 = vrot.lane.b32.xlu0 %v1062, 34
        %v1066 = vpop.permute.xlu0 %1065
        %vm1067 = vcmask 277504
        %v1068 = vsel %vm1067, %v1064, %v1066
        %v1072 = vmul.f32 %v1053, %v1064
        %v1073 = vmul.f32 %v1054, %v1068
        %v1074 = vmul.f32 %v1055, %v1066
        %v1075 = vmul.f32 %v1056, %v1064
        %v1076 = vmul.f32 %v1057, %v1068
        %v1077 = vmul.f32 %v1058, %v1066
        %1081 = vrot.lane.b32.xlu0 %v1072, 94
        %v1082 = vpop.permute.xlu0 %1081
        %1083 = vrot.lane.b32.xlu0 %v1073, 94
        %v1084 = vpop.permute.xlu0 %1083
        %1085 = vrot.lane.b32.xlu0 %v1074, 94
        %v1086 = vpop.permute.xlu0 %1085
        %vm1087 = vcmask 769024
        %v1088 = vsel %vm1087, %v1082, %v1084
        %v1089 = vsel %vm1087, %v1084, %v1086
        %1092 = vst [vmem:[#allocation5 + $0x80] sm:$0xff] %v1088
        %1093 = vst [vmem:[#allocation5 + $0x88] sm:$0xff] %v1089
        %1097 = vrot.lane.b32.xlu0 %v1075, 94
        %v1098 = vpop.permute.xlu0 %1097
        %1099 = vrot.lane.b32.xlu0 %v1076, 94
        %v1100 = vpop.permute.xlu0 %1099
        %1101 = vrot.lane.b32.xlu0 %v1077, 94
        %v1102 = vpop.permute.xlu0 %1101
        %v1103 = vsel %vm1087, %v1098, %v1100
        %v1104 = vsel %vm1087, %v1100, %v1102
        %1107 = vmatpush.xpose.msra.mxu0 0.0
        %1108 = vmatpush.xpose.msra.mxu0 0.0
        %1109 = vmatpush.xpose.msra.mxu0 0.0
        %1110 = vmatpush.xpose.msra.mxu0 0.0
        %1111 = vmatpush.xpose.msra.mxu0 0.0
        %1112 = vmatpush.xpose.msra.mxu0 0.0
        %1113 = vmatpush.xpose.msra.mxu0 0.0
        %1114 = vmatpush.xpose.msra.mxu0 0.0
        %1115 = vmatpush.xpose.msra.mxu0 0.0
        %1116 = vmatpush.xpose.msra.mxu0 0.0
        %1117 = vmatpush.xpose.msra.mxu0 0.0
        %1118 = vmatpush.xpose.msra.mxu0 0.0
        %1119 = vmatpush.xpose.msra.mxu0 0.0
        %1120 = vmatpush.xpose.msra.mxu0 0.0
        %1121 = vmatpush.xpose.msra.mxu0 %v385
        %1122 = vmatpush.xpose.msra.mxu0 %v383
        %1123 = vmatmul.f32.gmra.mxu0 %v1103
        %v1124 = vpop.f32.mrf.mxu0
        %v1125 = vadd.f32 0.0, %v1124
        %1126 = vdwg.mxu0
        %1127 = vmatpush.xpose.msra.mxu0 0.0
        %1128 = vmatpush.xpose.msra.mxu0 0.0
        %1129 = vmatpush.xpose.msra.mxu0 0.0
        %1130 = vmatpush.xpose.msra.mxu0 0.0
        %1131 = vmatpush.xpose.msra.mxu0 0.0
        %1132 = vmatpush.xpose.msra.mxu0 0.0
        %1133 = vmatpush.xpose.msra.mxu0 0.0
        %1134 = vmatpush.xpose.msra.mxu0 0.0
        %1135 = vmatpush.xpose.msra.mxu0 0.0
        %1136 = vmatpush.xpose.msra.mxu0 0.0
        %1137 = vmatpush.xpose.msra.mxu0 0.0
        %1138 = vmatpush.xpose.msra.mxu0 0.0
        %1139 = vmatpush.xpose.msra.mxu0 0.0
        %1140 = vmatpush.xpose.msra.mxu0 0.0
        %1141 = vmatpush.xpose.msra.mxu0 %v386
        %1142 = vmatpush.xpose.msra.mxu0 %v384
        %1143 = vmatmul.f32.gmra.mxu0 %v1104
        %v1144 = vpop.f32.mrf.mxu0
        %v1145 = vadd.f32 %v1125, %v1144
        %1146 = vdwg.mxu0
        %1147 = vst.msk [vmem:[#allocation6 + $0x40] sm:$0xff] %vm443, %v1145
        %v1148 = vld [vmem:[#allocation6] sm:$0xff]
        %v1149 = vld [vmem:[#allocation6 + $0x8] sm:$0xff]
        %v1150 = vld [vmem:[#allocation6 + $0x10] sm:$0xff]
        %v1151 = vld [vmem:[#allocation6 + $0x18] sm:$0xff]
        %v1152 = vld [vmem:[#allocation6 + $0x20] sm:$0xff]
        %v1153 = vld [vmem:[#allocation6 + $0x28] sm:$0xff]
        %v1154 = vld [vmem:[#allocation6 + $0x30] sm:$0xff]
        %v1155 = vld [vmem:[#allocation6 + $0x38] sm:$0xff]
        %v1156 = vld [vmem:[#allocation6 + $0x40] sm:$0xff]
        %v1157 = vld [vmem:[#allocation5] sm:$0xff]
        %v1158 = vld [vmem:[#allocation5 + $0x8] sm:$0xff]
        %v1159 = vld [vmem:[#allocation5 + $0x10] sm:$0xff]
        %v1160 = vld [vmem:[#allocation5 + $0x18] sm:$0xff]
        %v1161 = vld [vmem:[#allocation5 + $0x20] sm:$0xff]
        %v1162 = vld [vmem:[#allocation5 + $0x28] sm:$0xff]
        %v1163 = vld [vmem:[#allocation5 + $0x30] sm:$0xff]
        %v1164 = vld [vmem:[#allocation5 + $0x38] sm:$0xff]
        %v1165 = vld [vmem:[#allocation5 + $0x40] sm:$0xff]
        %v1166 = vld [vmem:[#allocation5 + $0x48] sm:$0xff]
        %v1167 = vld [vmem:[#allocation5 + $0x50] sm:$0xff]
        %v1168 = vld [vmem:[#allocation5 + $0x58] sm:$0xff]
        %v1169 = vld [vmem:[#allocation5 + $0x60] sm:$0xff]
        %v1170 = vld [vmem:[#allocation5 + $0x68] sm:$0xff]
        %v1171 = vld [vmem:[#allocation5 + $0x70] sm:$0xff]
        %v1172 = vld [vmem:[#allocation5 + $0x78] sm:$0xff]
        %v1173 = vld [vmem:[#allocation5 + $0x80] sm:$0xff]
        %v1174 = vld [vmem:[#allocation5 + $0x88] sm:$0xff]
        %1175 = vxpose.xlu0.b32.start [1/16] %v1148, 128
        %1176 = vxpose.xlu0.b32.cont [2/16] %v1149, 128
        %1177 = vxpose.xlu0.b32.cont [3/16] %v1150, 128
        %1178 = vxpose.xlu0.b32.cont [4/16] %v1151, 128
        %1179 = vxpose.xlu0.b32.cont [5/16] %v1152, 128
        %1180 = vxpose.xlu0.b32.cont [6/16] %v1153, 128
        %1181 = vxpose.xlu0.b32.cont [7/16] %v1154, 128
        %1182 = vxpose.xlu0.b32.cont [8/16] %v1155, 128
        %1183 = vxpose.xlu0.b32.cont [9/16] %v1156, 128
        %1184 = vxpose.xlu0.b32.cont [10/16] 0.0, 128
        %1185 = vxpose.xlu0.b32.cont [11/16] 0.0, 128
        %1186 = vxpose.xlu0.b32.cont [12/16] 0.0, 128
        %1187 = vxpose.xlu0.b32.cont [13/16] 0.0, 128
        %1188 = vxpose.xlu0.b32.cont [14/16] 0.0, 128
        %1189 = vxpose.xlu0.b32.cont [15/16] 0.0, 128
        %1190 = vxpose.xlu0.b32.end [16/16] 0.0, 128
        %v1191 = vpop.trf.xlu0
        %v1192 = vpop.trf.xlu0
        %v1193 = vpop.trf.xlu0
        %v1194 = vpop.trf.xlu0
        %v1195 = vpop.trf.xlu0
        %v1196 = vpop.trf.xlu0
        %v1197 = vpop.trf.xlu0
        %v1198 = vpop.trf.xlu0
        %v1199 = vpop.trf.xlu0
        %v1200 = vpop.trf.xlu0
        %v1201 = vpop.trf.xlu0
        %v1202 = vpop.trf.xlu0
        %v1203 = vpop.trf.xlu0
        %v1204 = vpop.trf.xlu0
        %v1205 = vpop.trf.xlu0
        %v1206 = vpop.trf.xlu0
        %vm1207 = vcmask 588800
        %v1209 = vsel %vm1207, %v1191, 0
        %v1212 = vsel %vm1207, %v1192, 0
        %1214 = vmatpush.msra.mxu0 0.0
        %1215 = vmatpush.msra.mxu0 0.0
        %1216 = vmatpush.msra.mxu0 0.0
        %1217 = vmatpush.msra.mxu0 0.0
        %1218 = vmatpush.msra.mxu0 0.0
        %1219 = vmatpush.msra.mxu0 0.0
        %1220 = vmatpush.msra.mxu0 0.0
        %1221 = vmatpush.msra.mxu0 %v1173
        %1222 = vmatpush.msra.mxu0 %v1171
        %1223 = vmatpush.msra.mxu0 %v1169
        %1224 = vmatpush.msra.mxu0 %v1167
        %1225 = vmatpush.msra.mxu0 %v1165
        %1226 = vmatpush.msra.mxu0 %v1163
        %1227 = vmatpush.msra.mxu0 %v1161
        %1228 = vmatpush.msra.mxu0 %v1159
        %1229 = vmatpush.msra.mxu0 %v1157
        %1230 = vmatmul.f32.gmra.mxu0 %v1209
        %v1231 = vpop.f32.mrf.mxu0
        %v1232 = vadd.f32 0.0, %v1231
        %1233 = vmatmul.f32.gmra.mxu0 %v1212
        %v1234 = vpop.f32.mrf.mxu0
        %v1235 = vadd.f32 0.0, %v1234
        %1236 = vdwg.mxu0
        %1237 = vmatpush.msra.mxu0 0.0
        %1238 = vmatpush.msra.mxu0 0.0
        %1239 = vmatpush.msra.mxu0 0.0
        %1240 = vmatpush.msra.mxu0 0.0
        %1241 = vmatpush.msra.mxu0 0.0
        %1242 = vmatpush.msra.mxu0 0.0
        %1243 = vmatpush.msra.mxu0 0.0
        %1244 = vmatpush.msra.mxu0 %v1174
        %1245 = vmatpush.msra.mxu0 %v1172
        %1246 = vmatpush.msra.mxu0 %v1170
        %1247 = vmatpush.msra.mxu0 %v1168
        %1248 = vmatpush.msra.mxu0 %v1166
        %1249 = vmatpush.msra.mxu0 %v1164
        %1250 = vmatpush.msra.mxu0 %v1162
        %1251 = vmatpush.msra.mxu0 %v1160
        %1252 = vmatpush.msra.mxu0 %v1158
        %1253 = vmatmul.f32.gmra.mxu0 %v1209
        %v1254 = vpop.f32.mrf.mxu0
        %v1255 = vadd.f32 0.0, %v1254
        %1256 = vmatmul.f32.gmra.mxu0 %v1212
        %v1257 = vpop.f32.mrf.mxu0
        %v1258 = vadd.f32 0.0, %v1257
        %1259 = vdwg.mxu0
        %v1260 = vadd.f32 %v1235, 1e-06
        %v1261 = vadd.f32 %v1258, 1e-06
        %v1262 = vrcp.pop %v1260
        %v1263 = vmul.f32 %v1260, %v1262
        %v1264 = vsub.f32 1.0, %v1263
        %v1265 = vmul.f32 %v1262, %v1264
        %v1266 = vadd.f32 %v1262, %v1265
        %vm1267 = vweird.f32 %v1260
        %vm1268 = vweird.f32 %v1262
        %vm1269 = vmor %vm1267, %vm1268
        %v1270 = vsel %vm1269, %v1262, %v1266
        %v1271 = vand.u32 2147483647, %v1260
        %vm1272 = vcmp.eq.f32.partialorder %v1271, 8.507059e+37
        %v1273 = vand.u32 %v1260, 2147483648
        %v1274 = vor.u32 1.1754944e-38, %v1273
        %v1275 = vsel %vm1272, %v1274, %v1270
        %v1276 = vrcp.pop %v1261
        %v1277 = vmul.f32 %v1261, %v1276
        %v1278 = vsub.f32 1.0, %v1277
        %v1279 = vmul.f32 %v1276, %v1278
        %v1280 = vadd.f32 %v1276, %v1279
        %vm1281 = vweird.f32 %v1261
        %vm1282 = vweird.f32 %v1276
        %vm1283 = vmor %vm1281, %vm1282
        %v1284 = vsel %vm1283, %v1276, %v1280
        %v1285 = vand.u32 2147483647, %v1261
        %vm1286 = vcmp.eq.f32.partialorder %v1285, 8.507059e+37
        %v1287 = vand.u32 %v1261, 2147483648
        %v1288 = vor.u32 1.1754944e-38, %v1287
        %v1289 = vsel %vm1286, %v1288, %v1284
        %v1290 = vperm.slane %v1275, 0
        %v1291 = vperm.slane %v1289, 0
        %v1292 = vmul.f32 %v1232, %v1290
        %v1293 = vmul.f32 %v1255, %v1291
        %1294 = vst [vmem:[%s234] sm:$0xff] %v1292
        %1295 = vst [vmem:[%s234 + $0x8] sm:$0xff] %v1293
        %s1296 = sand.u32 %s139, 1
        %s1297 = scalar_lea.sflag [#allocation8], %s1296
        %s1298 = sand.u32 %s139, 1
        %s1299 = smul.addr %s1298, 16
        %s1300 = scalar_lea.vmem [#allocation7], %s1299
        // Predicated region
        $region37: #{tpu_custom_call.1} parent=35 // pred_check
          %p1301 = pneg %p149
        $region38: #{tpu_custom_call.1} parent=35 // pred_check_branch
          %1303 = sbr.rel (%p1301) target = $region40
        $region39: #{tpu_custom_call.1} parent=35 // pred_region
          %1305 = vsyncadd %s1297, 0
          %s1306 = smul.addr %s23, 2
          %s1307 = smul.addr %s22, 4
          %s1308 = sadd.s32 %s1306, %s1307
          %s1309 = smul.addr %s1308, 8
          %s1310 = scalar_lea.hbm %s4, %s1309
          %s1312 = sshll.u32 %s1300, 4
          %s1313 = int_to_ptr.vmem [resolvable:$true] %s1312
          %s1314 = sshll.u32 %s1310, 4
          %s1315 = int_to_ptr.hbm [resolvable:$true] %s1314
          %1317 = dma.vmem_to_hbm [thread:$0]  %s1313, 256, %s1315, %s1297
        $region40: #{tpu_custom_call.1} parent=35 // pred_fallthru
          _
      $region36: #{tpu_custom_call.1} parent=5 // pred_fallthru
        _
      %p1318 = scmp.le.s32.totalorder 2, %s13
      // Predicated region
      $region41: #{tpu_custom_call.1} parent=5 // pred_check
        %p1319 = pneg %p1318
      $region42: #{tpu_custom_call.1} parent=5 // pred_check_branch
        %1321 = sbr.rel (%p1319) target = $region44
      $region43: #{tpu_custom_call.1} parent=5 // pred_region
        %s1322 = ssub.s32 %s13, 2
        // Predicated region
        $region45: #{tpu_custom_call.1} parent=43 // pred_check
          %p1323 = pneg %p155
        $region46: #{tpu_custom_call.1} parent=43 // pred_check_branch
          %1325 = sbr.rel (%p1323) target = $region48
        $region47: #{tpu_custom_call.1} parent=43 // pred_region
          %s1326 = sand.u32 %s140, 1
          %s1327 = scalar_lea.sflag [#allocation8], %s1326
          %s1328 = sand.u32 %s140, 1
          %s1329 = smul.addr %s1328, 16
          %s1330 = scalar_lea.vmem [#allocation7], %s1329
          %1332 = dma.done %s1327, 256
        $region48: #{tpu_custom_call.1} parent=43 // pred_fallthru
          _
      $region44: #{tpu_custom_call.1} parent=5 // pred_fallthru
        _
    $region6: #{tpu_custom_call.1} parent=1 // loop_footer
      %s17 = sadd.s32 1, %s13
    $region7: #{tpu_custom_call.1} parent=1 // loop_footer_branch
      %12 = sbr.rel target = $region3
    $region8: #{tpu_custom_call.1} parent=1 // loop_exit
      _
    %1333 = vsyncpa [#allocation8], 1
    %s1334 = scalar_lea.sflag [#allocation8], 1
    %1335 = vsyncpa %s1334, 1

</llo_original>
